<compile_context>
chip_gen: v6e
topology: v6e:2x2x1
jax: 0.10.0
libtpu: 0.0.40
codegen_flags: <defaults>
</compile_context>

<pallas_src>
import functools

import jax
import jax.numpy as jnp
from jax import lax
from jax.experimental import pallas as pl
from jax.experimental.pallas import tpu as pltpu


_VMEM_LIMIT = 32 * 1024 * 1024  # safe scoped-VMEM budget on v5e / v6e / v7x


def _logits_tile(rho_ref, alphas_ref):
    # (tileV, E) . (T, E)^T -> (tileV, T); bf16 MXU operands, f32 accumulate.
    return lax.dot_general(
        rho_ref[...].astype(jnp.bfloat16),
        alphas_ref[...].astype(jnp.bfloat16),
        (((1,), (1,)), ((), ())),
        preferred_element_type=jnp.float32,
    )


def _lse_kernel(rho_ref, alphas_ref, lse_ref, m_sc, l_sc):
    """Pass 1: online per-topic (column) max / sum-of-exp over V tiles."""
    i = pl.program_id(0)

    @pl.when(i == 0)
    def _():
        m_sc[...] = jnp.full(m_sc.shape, -jnp.inf, dtype=m_sc.dtype)
        l_sc[...] = jnp.zeros(l_sc.shape, dtype=l_sc.dtype)

    logits = _logits_tile(rho_ref, alphas_ref)                     # (tileV, T)
    m_new = jnp.maximum(m_sc[...], jnp.max(logits, axis=0, keepdims=True))
    l_sc[...] = (l_sc[...] * jnp.exp(m_sc[...] - m_new)
                 + jnp.sum(jnp.exp(logits - m_new), axis=0, keepdims=True))
    m_sc[...] = m_new

    @pl.when(i == pl.num_programs(0) - 1)
    def _():
        lse_ref[...] = m_sc[...] + jnp.log(l_sc[...])


def _out_kernel(rho_ref, alphas_ref, x_ref, lse_ref, out_ref):
    """Pass 2: out_tile = exp(logits_tile - lse) @ x (denominator folded in lse)."""
    logits = _logits_tile(rho_ref, alphas_ref)                     # (tileV, T)
    w = jnp.exp(logits - lse_ref[...])                             # stable column softmax
    out_ref[...] = jnp.dot(
        w.astype(jnp.bfloat16),
        x_ref[...].astype(jnp.bfloat16),
        preferred_element_type=jnp.float32,
    ).astype(out_ref.dtype)


def _pick_tile_v(v, max_tile=2048):
    for t in (max_tile, 1024, 512, 256, 128, 64, 32, 16, 8):
        if t <= v and v % t == 0:
            return t
    return v


@functools.partial(jax.jit, static_argnames=("t", "tile_v"))
def conv1d_softmax_etm(rho, alphas, x, t=0, tile_v=None):
    """Forward pass of Conv1DSoftmaxEtm.

    rho:    (V, E) float32
    alphas: (T, E) float32
    x:      (..., N) with prod(leading dims) == T; flattened to (T, N)
    t:      ignored for forward numerics (detach() only changes autograd).
    """
    del t  # forward-identical in both branches
    v, e = rho.shape
    tt, e2 = alphas.shape
    assert e == e2, "rho / alphas embedding sizes must match"
    x2d = x.reshape(-1, x.shape[-1])
    assert x2d.shape[0] == tt, "leading dims of x must flatten to topic_size"
    n = x2d.shape[1]

    tv = _pick_tile_v(v) if tile_v is None else tile_v
    assert v % tv == 0, "tile_v must divide voc_size"
    num_v = v // tv

    # ---- Pass 1: per-topic logsumexp over the whole vocab axis (reduction). ----
    lse = pl.pallas_call(
        _lse_kernel,
        out_shape=jax.ShapeDtypeStruct((1, tt), jnp.float32),
        grid=(num_v,),
        in_specs=[
            pl.BlockSpec((tv, e), lambda i: (i, 0)),      # rho: streamed V-tiles
            pl.BlockSpec((tt, e), lambda i: (0, 0)),      # alphas: VMEM-resident
        ],
        out_specs=pl.BlockSpec((1, tt), lambda i: (0, 0)),
        scratch_shapes=[
            pltpu.VMEM((1, tt), jnp.float32),             # running column max
            pltpu.VMEM((1, tt), jnp.float32),             # running sum of exp
        ],
        compiler_params=pltpu.CompilerParams(
            dimension_semantics=("arbitrary",),           # reduction over V tiles
            vmem_limit_bytes=_VMEM_LIMIT,
        ),
    )(rho, alphas)

    # ---- Pass 2: independent V-tiles -> "parallel" (megacore-shardable). ----
    out = pl.pallas_call(
        _out_kernel,
        out_shape=jax.ShapeDtypeStruct((v, n), jnp.float32),
        grid=(num_v,),
        in_specs=[
            pl.BlockSpec((tv, e), lambda i: (i, 0)),      # rho: streamed V-tiles
            pl.BlockSpec((tt, e), lambda i: (0, 0)),      # alphas: resident
            pl.BlockSpec((tt, n), lambda i: (0, 0)),      # x: resident
            pl.BlockSpec((1, tt), lambda i: (0, 0)),      # lse: resident
        ],
        out_specs=pl.BlockSpec((tv, n), lambda i: (i, 0)),  # lane-dense output tiles
        compiler_params=pltpu.CompilerParams(
            dimension_semantics=("parallel",),
            vmem_limit_bytes=_VMEM_LIMIT,
        ),
    )(rho, alphas, x2d, lse)
    return out


def _reference(rho, alphas, x):
    logits = rho @ alphas.T
    w = jax.nn.softmax(logits, axis=0)
    return w @ x.reshape(-1, x.shape[-1])


if __name__ == "__main__":
    # Small but multi-tile shapes consistent with the module:
    # voc_size=2048 split into 4 V-tiles of 512, topic_size=16, emb_size=32, n_feat=128.
    voc_size, topic_size, emb_size, n_feat = 2048, 16, 32, 128

    key = jax.random.PRNGKey(0)
    k_rho, k_alpha, k_x = jax.random.split(key, 3)

    # Deterministic parameter init mirroring nn.init.normal_(std=0.02).
    rho = 0.02 * jax.random.normal(k_rho, (voc_size, emb_size), dtype=jnp.float32)
    alphas = 0.02 * jax.random.normal(k_alpha, (topic_size, emb_size), dtype=jnp.float32)

    # x.view(-1, x.size(-1)) must have topic_size rows.
    x = jax.random.normal(k_x, (topic_size, n_feat), dtype=jnp.float32)

    out = conv1d_softmax_etm(rho, alphas, x, t=0, tile_v=512)
    out = jax.block_until_ready(out)

    ref = _reference(rho, alphas, x)
    assert out.shape == (voc_size, n_feat)
    # bf16 MXU operands -> slightly loosened tolerance vs the pure-f32 reference.
    assert jnp.allclose(out, ref, atol=2e-4, rtol=2e-2), "mismatch vs reference"

    print("KERNEL_OK")
</pallas_src>

<mosaic_0001>
module attributes {stable_mosaic.version = 11 : i64} {
  func.func @_lse_kernel(%arg0: i32, %arg1: memref<512x32xf32, #tpu.memory_space<vmem>>, %arg2: memref<16x32xf32, #tpu.memory_space<vmem>>, %arg3: memref<1x16xf32, #tpu.memory_space<vmem>>, %arg4: memref<1x16xf32, #tpu.memory_space<vmem>>, %arg5: memref<1x16xf32, #tpu.memory_space<vmem>>) attributes {dimension_semantics = [#tpu.dimension_semantics<arbitrary>], iteration_bounds = array<i64: 4>, scalar_prefetch = 0 : i64, scratch_operands = 2 : i64, tpu.core_type = #tpu.core_type<tc>, window_params = [{transform_indices = @transform_0, window_bounds = array<i64: 512, 32>}, {pipeline_mode = #tpu.pipeline_mode<synchronous>, transform_indices = @transform_1, window_bounds = array<i64: 16, 32>}, {pipeline_mode = #tpu.pipeline_mode<synchronous>, transform_indices = @transform_2, window_bounds = array<i64: 1, 16>}]} {
    %c0_i32 = arith.constant 0 : i32
    %0 = arith.cmpi eq, %arg0, %c0_i32 : i32
    %1 = arith.extui %0 : i1 to i32
    %c0_i32_0 = arith.constant 0 : i32
    %2 = arith.cmpi ne, %1, %c0_i32_0 : i32
    scf.if %2 {
      %cst_17 = arith.constant 0xFF800000 : f32
      %28 = vector.broadcast %cst_17 : f32 to vector<1x16xf32>
      %c0_18 = arith.constant 0 : index
      %c0_19 = arith.constant 0 : index
      %29 = vector.load %arg4[%c0_18, %c0_19] : memref<1x16xf32, #tpu.memory_space<vmem>>, vector<1x16xf32>
      tpu.vector_store %arg4[%c0_18, %c0_19], %28 {strides = array<i32>} : memref<1x16xf32, #tpu.memory_space<vmem>>, vector<1x16xf32>,
      %cst_20 = arith.constant 0.000000e+00 : f32
      %30 = vector.broadcast %cst_20 : f32 to vector<1x16xf32>
      %c0_21 = arith.constant 0 : index
      %c0_22 = arith.constant 0 : index
      %31 = vector.load %arg5[%c0_21, %c0_22] : memref<1x16xf32, #tpu.memory_space<vmem>>, vector<1x16xf32>
      tpu.vector_store %arg5[%c0_21, %c0_22], %30 {strides = array<i32>} : memref<1x16xf32, #tpu.memory_space<vmem>>, vector<1x16xf32>,
    } else {
    }
    %c0 = arith.constant 0 : index
    %c0_1 = arith.constant 0 : index
    %3 = vector.load %arg1[%c0, %c0_1] : memref<512x32xf32, #tpu.memory_space<vmem>>, vector<512x32xf32>
    %4 = arith.truncf %3 : vector<512x32xf32> to vector<512x32xbf16>
    %c0_2 = arith.constant 0 : index
    %c0_3 = arith.constant 0 : index
    %5 = vector.load %arg2[%c0_2, %c0_3] : memref<16x32xf32, #tpu.memory_space<vmem>>, vector<16x32xf32>
    %6 = arith.truncf %5 : vector<16x32xf32> to vector<16x32xbf16>
    %cst = arith.constant dense<0.000000e+00> : vector<512x16xf32>
    %7 = tpu.matmul %4, %6, %cst {dimension_numbers = #tpu.dot_dimension_numbers<[1], [1], [0], [0], [0, 0, 1, 0], [], []>} : vector<512x32xbf16>, vector<16x32xbf16>, vector<512x16xf32> -> vector<512x16xf32>
    %c0_4 = arith.constant 0 : index
    %c0_5 = arith.constant 0 : index
    %8 = vector.load %arg4[%c0_4, %c0_5] : memref<1x16xf32, #tpu.memory_space<vmem>>, vector<1x16xf32>
    %cst_6 = arith.constant dense<0xFF800000> : vector<16xf32>
    %9 = vector.multi_reduction <maximumf>, %7, %cst_6 [0] : vector<512x16xf32> to vector<16xf32>
    %10 = vector.shape_cast %9 : vector<16xf32> to vector<1x16xf32>
    %11 = arith.maximumf %8, %10 : vector<1x16xf32>
    %c0_7 = arith.constant 0 : index
    %c0_8 = arith.constant 0 : index
    %12 = vector.load %arg5[%c0_7, %c0_8] : memref<1x16xf32, #tpu.memory_space<vmem>>, vector<1x16xf32>
    %c0_9 = arith.constant 0 : index
    %c0_10 = arith.constant 0 : index
    %13 = vector.load %arg4[%c0_9, %c0_10] : memref<1x16xf32, #tpu.memory_space<vmem>>, vector<1x16xf32>
    %14 = arith.subf %13, %11 : vector<1x16xf32>
    %15 = math.exp %14 : vector<1x16xf32>
    %16 = arith.mulf %12, %15 : vector<1x16xf32>
    %17 = vector.broadcast %11 : vector<1x16xf32> to vector<512x16xf32>
    %18 = arith.subf %7, %17 : vector<512x16xf32>
    %19 = math.exp %18 : vector<512x16xf32>
    %cst_11 = arith.constant dense<0.000000e+00> : vector<16xf32>
    %20 = vector.multi_reduction <add>, %19, %cst_11 [0] : vector<512x16xf32> to vector<16xf32>
    %21 = vector.shape_cast %20 : vector<16xf32> to vector<1x16xf32>
    %22 = arith.addf %16, %21 : vector<1x16xf32>
    %c0_12 = arith.constant 0 : index
    %c0_13 = arith.constant 0 : index
    %23 = vector.load %arg5[%c0_12, %c0_13] : memref<1x16xf32, #tpu.memory_space<vmem>>, vector<1x16xf32>
    tpu.vector_store %arg5[%c0_12, %c0_13], %22 {strides = array<i32>} : memref<1x16xf32, #tpu.memory_space<vmem>>, vector<1x16xf32>,
    %c0_14 = arith.constant 0 : index
    %c0_15 = arith.constant 0 : index
    %24 = vector.load %arg4[%c0_14, %c0_15] : memref<1x16xf32, #tpu.memory_space<vmem>>, vector<1x16xf32>
    tpu.vector_store %arg4[%c0_14, %c0_15], %11 {strides = array<i32>} : memref<1x16xf32, #tpu.memory_space<vmem>>, vector<1x16xf32>,
    %c3_i32 = arith.constant 3 : i32
    %25 = arith.cmpi eq, %arg0, %c3_i32 : i32
    %26 = arith.extui %25 : i1 to i32
    %c0_i32_16 = arith.constant 0 : i32
    %27 = arith.cmpi ne, %26, %c0_i32_16 : i32
    scf.if %27 {
      %c0_17 = arith.constant 0 : index
      %c0_18 = arith.constant 0 : index
      %28 = vector.load %arg4[%c0_17, %c0_18] : memref<1x16xf32, #tpu.memory_space<vmem>>, vector<1x16xf32>
      %c0_19 = arith.constant 0 : index
      %c0_20 = arith.constant 0 : index
      %29 = vector.load %arg5[%c0_19, %c0_20] : memref<1x16xf32, #tpu.memory_space<vmem>>, vector<1x16xf32>
      %30 = math.log %29 : vector<1x16xf32>
      %31 = arith.addf %28, %30 : vector<1x16xf32>
      %c0_21 = arith.constant 0 : index
      %c0_22 = arith.constant 0 : index
      %32 = vector.load %arg3[%c0_21, %c0_22] : memref<1x16xf32, #tpu.memory_space<vmem>>, vector<1x16xf32>
      tpu.vector_store %arg3[%c0_21, %c0_22], %31 {strides = array<i32>} : memref<1x16xf32, #tpu.memory_space<vmem>>, vector<1x16xf32>,
    } else {
    }
    return
  }
  func.func @transform_0(%arg0: i32) -> (i32, i32) {
    %c0_i32 = arith.constant 0 : i32
    %c0_i32_0 = arith.constant 0 : i32
    return %arg0, %c0_i32 : i32, i32
  }
  func.func @transform_1(%arg0: i32) -> (i32, i32) {
    %c0_i32 = arith.constant 0 : i32
    %c0_i32_0 = arith.constant 0 : i32
    %c0_i32_1 = arith.constant 0 : i32
    return %c0_i32, %c0_i32_0 : i32, i32
  }
  func.func @transform_2(%arg0: i32) -> (i32, i32) {
    %c0_i32 = arith.constant 0 : i32
    %c0_i32_0 = arith.constant 0 : i32
    %c0_i32_1 = arith.constant 0 : i32
    return %c0_i32, %c0_i32_0 : i32, i32
  }
}

module attributes {stable_mosaic.version = 11 : i64} {
  func.func @_out_kernel(%arg0: i32, %arg1: memref<512x32xf32, #tpu.memory_space<vmem>>, %arg2: memref<16x32xf32, #tpu.memory_space<vmem>>, %arg3: memref<16x128xf32, #tpu.memory_space<vmem>>, %arg4: memref<1x16xf32, #tpu.memory_space<vmem>>, %arg5: memref<512x128xf32, #tpu.memory_space<vmem>>) attributes {dimension_semantics = [#tpu.dimension_semantics<parallel>], iteration_bounds = array<i64: 4>, scalar_prefetch = 0 : i64, scratch_operands = 0 : i64, tpu.core_type = #tpu.core_type<tc>, window_params = [{transform_indices = @transform_0, window_bounds = array<i64: 512, 32>}, {pipeline_mode = #tpu.pipeline_mode<synchronous>, transform_indices = @transform_1, window_bounds = array<i64: 16, 32>}, {pipeline_mode = #tpu.pipeline_mode<synchronous>, transform_indices = @transform_2, window_bounds = array<i64: 16, 128>}, {pipeline_mode = #tpu.pipeline_mode<synchronous>, transform_indices = @transform_3, window_bounds = array<i64: 1, 16>}, {transform_indices = @transform_4, window_bounds = array<i64: 512, 128>}]} {
    %c0 = arith.constant 0 : index
    %c0_0 = arith.constant 0 : index
    %0 = vector.load %arg1[%c0, %c0_0] : memref<512x32xf32, #tpu.memory_space<vmem>>, vector<512x32xf32>
    %1 = arith.truncf %0 : vector<512x32xf32> to vector<512x32xbf16>
    %c0_1 = arith.constant 0 : index
    %c0_2 = arith.constant 0 : index
    %2 = vector.load %arg2[%c0_1, %c0_2] : memref<16x32xf32, #tpu.memory_space<vmem>>, vector<16x32xf32>
    %3 = arith.truncf %2 : vector<16x32xf32> to vector<16x32xbf16>
    %cst = arith.constant dense<0.000000e+00> : vector<512x16xf32>
    %4 = tpu.matmul %1, %3, %cst {dimension_numbers = #tpu.dot_dimension_numbers<[1], [1], [0], [0], [0, 0, 1, 0], [], []>} : vector<512x32xbf16>, vector<16x32xbf16>, vector<512x16xf32> -> vector<512x16xf32>
    %c0_3 = arith.constant 0 : index
    %c0_4 = arith.constant 0 : index
    %5 = vector.load %arg4[%c0_3, %c0_4] : memref<1x16xf32, #tpu.memory_space<vmem>>, vector<1x16xf32>
    %6 = vector.broadcast %5 : vector<1x16xf32> to vector<512x16xf32>
    %7 = arith.subf %4, %6 : vector<512x16xf32>
    %8 = math.exp %7 : vector<512x16xf32>
    %9 = arith.truncf %8 : vector<512x16xf32> to vector<512x16xbf16>
    %c0_5 = arith.constant 0 : index
    %c0_6 = arith.constant 0 : index
    %10 = vector.load %arg3[%c0_5, %c0_6] : memref<16x128xf32, #tpu.memory_space<vmem>>, vector<16x128xf32>
    %11 = arith.truncf %10 : vector<16x128xf32> to vector<16x128xbf16>
    %cst_7 = arith.constant dense<0.000000e+00> : vector<512x128xf32>
    %12 = tpu.matmul %9, %11, %cst_7 {dimension_numbers = #tpu.dot_dimension_numbers<[1], [0], [0], [1], [0, 0, 1, 1], [], []>} : vector<512x16xbf16>, vector<16x128xbf16>, vector<512x128xf32> -> vector<512x128xf32>
    %c0_8 = arith.constant 0 : index
    %c0_9 = arith.constant 0 : index
    %13 = vector.load %arg5[%c0_8, %c0_9] : memref<512x128xf32, #tpu.memory_space<vmem>>, vector<512x128xf32>
    tpu.vector_store %arg5[%c0_8, %c0_9], %12 {strides = array<i32>} : memref<512x128xf32, #tpu.memory_space<vmem>>, vector<512x128xf32>,
    return
  }
  func.func @transform_0(%arg0: i32) -> (i32, i32) {
    %c0_i32 = arith.constant 0 : i32
    %c0_i32_0 = arith.constant 0 : i32
    return %arg0, %c0_i32 : i32, i32
  }
  func.func @transform_1(%arg0: i32) -> (i32, i32) {
    %c0_i32 = arith.constant 0 : i32
    %c0_i32_0 = arith.constant 0 : i32
    %c0_i32_1 = arith.constant 0 : i32
    return %c0_i32, %c0_i32_0 : i32, i32
  }
  func.func @transform_2(%arg0: i32) -> (i32, i32) {
    %c0_i32 = arith.constant 0 : i32
    %c0_i32_0 = arith.constant 0 : i32
    %c0_i32_1 = arith.constant 0 : i32
    return %c0_i32, %c0_i32_0 : i32, i32
  }
  func.func @transform_3(%arg0: i32) -> (i32, i32) {
    %c0_i32 = arith.constant 0 : i32
    %c0_i32_0 = arith.constant 0 : i32
    %c0_i32_1 = arith.constant 0 : i32
    return %c0_i32, %c0_i32_0 : i32, i32
  }
  func.func @transform_4(%arg0: i32) -> (i32, i32) {
    %c0_i32 = arith.constant 0 : i32
    %c0_i32_0 = arith.constant 0 : i32
    return %arg0, %c0_i32 : i32, i32
  }
}

</mosaic_0001>

<llo_original>
// kernel: conv1d_softmax_etm.2
$region0: #{conv1d_softmax_etm.2}
  #allocation0 [shape = 'u32[]', space=smem, size = 0x4, offset = 0x4, fixed_abs, tag = 'smem constant byte address 0x4 - core index']
  #allocation1 [shape = 'u32[144,128]{1,0:T(1,128)}', space=vmem, size = 0x12000, scoped, tag = 'internal scratch']
  #allocation2 [shape = 'f32[1,16]{1,0:T(1,128)}', space=vmem, size = 0x200, scoped, tag = 'scratch operand']
  #allocation3 [shape = 'f32[1,16]{1,0:T(1,128)}', space=vmem, size = 0x200, scoped, tag = 'scratch operand']
  %s0 = inlined_call_operand.vmem [shape: f32[2048,32], index: 0, kind: input, shape index: {}]
  %s1 = inlined_call_operand.vmem [shape: f32[16,32], index: 1, kind: input, shape index: {}]
  %s2 = inlined_call_operand.vmem [shape: f32[1,16], index: 2, kind: output, shape index: {}]
  %s3 = sld [smem:[#allocation0]]
  $region49: #{conv1d_softmax_etm.2} parent=0
    _
  %s5 = ssub.s32 1, %s3
  %s6 = scalar_select 0, %s5, %s3
  loop: start=0, step=1, limit=6
  $region2: #{conv1d_softmax_etm.2} parent=0 // loop_pre_header
    _
  $region3: #{conv1d_softmax_etm.2} parent=0 // loop_header
    %s8 = sphi 0, %s12
    %p9 = scmp.ge.s32.totalorder %s8, 6
    %s18 = sphi 0, %s20
    %s21 = sphi 0, %s18
    %s22 = sphi 0, %s21
    %s38 = sphi 0, %s22
    %s42 = sphi 0, %s42
    %s44 = sphi 0, %s42
    %s45 = sphi 0, %s44
    %s59 = sphi 0, %s45
    %s63 = sphi 0, %s63
    %s65 = sphi 0, %s63
    %s66 = sphi 0, %s65
    %s80 = sphi 0, %s66
  $region4: #{conv1d_softmax_etm.2} parent=0 // loop_header_branch
    %11 = sbr.rel (%p9) target = $region8
  $region5: #{conv1d_softmax_etm.2} parent=0 // loop_body
    %s13 = ssub.s32 %s8, 1
    %s14 = ssub.s32 %s8, 2
    %s15 = sadd.s32 %s8, 1
    %s16 = ssub.s32 %s8, %s15
    %p17 = scmp.eq.s32.totalorder %s16, 0
    %s19 = sadd.s32 %s18, 1
    %s20 = scalar_select %p17, %s18, %s19
    %p23 = pneg %p17
    %p24 = scmp.eq.s32.totalorder %s8, 3
    %p25 = por %p23, %p24
    %p26 = scmp.ne.s32.totalorder %s18, %s21
    %p27 = scmp.eq.s32.totalorder %s8, 0
    %p28 = por %p26, %p27
    %p29 = scmp.ne.s32.totalorder %s18, %s21
    %p30 = scmp.eq.s32.totalorder %s13, 3
    %p31 = por %p29, %p30
    %p32 = scmp.ne.s32.totalorder %s21, %s22
    %p33 = scmp.eq.s32.totalorder %s13, 0
    %p34 = por %p32, %p33
    %p35 = scmp.ne.s32.totalorder %s21, %s22
    %p36 = scmp.eq.s32.totalorder %s14, 3
    %p37 = por %p35, %p36
    %p39 = scmp.ne.s32.totalorder %s22, %s38
    %p40 = scmp.eq.s32.totalorder %s14, 0
    %p41 = por %p39, %p40
    %s43 = sadd.s32 %s42, 1
    %p46 = scmp.eq.s32.totalorder %s8, 3
    %p47 = scmp.ne.s32.totalorder %s42, %s44
    %p48 = scmp.eq.s32.totalorder %s8, 0
    %p49 = por %p47, %p48
    %p50 = scmp.ne.s32.totalorder %s42, %s44
    %p51 = scmp.eq.s32.totalorder %s13, 3
    %p52 = por %p50, %p51
    %p53 = scmp.ne.s32.totalorder %s44, %s45
    %p54 = scmp.eq.s32.totalorder %s13, 0
    %p55 = por %p53, %p54
    %p56 = scmp.ne.s32.totalorder %s44, %s45
    %p57 = scmp.eq.s32.totalorder %s14, 3
    %p58 = por %p56, %p57
    %p60 = scmp.ne.s32.totalorder %s45, %s59
    %p61 = scmp.eq.s32.totalorder %s14, 0
    %p62 = por %p60, %p61
    %s64 = sadd.s32 %s63, 1
    %p67 = scmp.eq.s32.totalorder %s8, 3
    %p68 = scmp.ne.s32.totalorder %s63, %s65
    %p69 = scmp.eq.s32.totalorder %s8, 0
    %p70 = por %p68, %p69
    %p71 = scmp.ne.s32.totalorder %s63, %s65
    %p72 = scmp.eq.s32.totalorder %s13, 3
    %p73 = por %p71, %p72
    %p74 = scmp.ne.s32.totalorder %s65, %s66
    %p75 = scmp.eq.s32.totalorder %s13, 0
    %p76 = por %p74, %p75
    %p77 = scmp.ne.s32.totalorder %s65, %s66
    %p78 = scmp.eq.s32.totalorder %s14, 3
    %p79 = por %p77, %p78
    %p81 = scmp.ne.s32.totalorder %s66, %s80
    %p82 = scmp.eq.s32.totalorder %s14, 0
    %p83 = por %p81, %p82
    %p84 = scmp.le.s32.totalorder 1, %s8
    %p85 = scmp.lt.s32.totalorder %s8, 5
    %p86 = pnand %p84, %p85
    %p87 = pneg %p86
    // Predicated region
    $region9: #{conv1d_softmax_etm.2} parent=5 // pred_check
      _
    $region10: #{conv1d_softmax_etm.2} parent=5 // pred_check_branch
      %89 = sbr.rel (%p86) target = $region12
    $region11: #{conv1d_softmax_etm.2} parent=5 // pred_region
      %s90 = ssub.s32 %s8, 1
      // Predicated region
      $region13: #{conv1d_softmax_etm.2} parent=11 // pred_check
        %p91 = pneg %p55
      $region14: #{conv1d_softmax_etm.2} parent=11 // pred_check_branch
        %93 = sbr.rel (%p91) target = $region16
      $region15: #{conv1d_softmax_etm.2} parent=11 // pred_region
        _
      $region16: #{conv1d_softmax_etm.2} parent=11 // pred_fallthru
        _
    $region12: #{conv1d_softmax_etm.2} parent=5 // pred_fallthru
      _
    %p94 = scmp.lt.s32.totalorder %s8, 4
    // Predicated region
    $region17: #{conv1d_softmax_etm.2} parent=5 // pred_check
      %p95 = pneg %p94
    $region18: #{conv1d_softmax_etm.2} parent=5 // pred_check_branch
      %97 = sbr.rel (%p95) target = $region20
    $region19: #{conv1d_softmax_etm.2} parent=5 // pred_region
      // Predicated region
      $region21: #{conv1d_softmax_etm.2} parent=19 // pred_check
        %p98 = pneg %p28
      $region22: #{conv1d_softmax_etm.2} parent=19 // pred_check_branch
        %100 = sbr.rel (%p98) target = $region24
      $region23: #{conv1d_softmax_etm.2} parent=19 // pred_region
        %s101 = smul.u32 64, %s8
        %p102 = scmp.lt.s32.totalorder %s101, 255
        %s103 = scalar_select %p102, %s101, 255
        %s104 = smul.addr %s103, 8
        %s105 = scalar_lea.vmem %s0, %s104
        %s106 = smul.u32 64, %s8
      $region24: #{conv1d_softmax_etm.2} parent=19 // pred_fallthru
        _
    $region20: #{conv1d_softmax_etm.2} parent=5 // pred_fallthru
      _
    %p107 = scmp.le.s32.totalorder 1, %s8
    %p108 = scmp.lt.s32.totalorder %s8, 5
    %p109 = pnand %p107, %p108
    %p110 = pneg %p109
    // Predicated region
    $region25: #{conv1d_softmax_etm.2} parent=5 // pred_check
      _
    $region26: #{conv1d_softmax_etm.2} parent=5 // pred_check_branch
      %112 = sbr.rel (%p109) target = $region28
    $region27: #{conv1d_softmax_etm.2} parent=5 // pred_region
      %s113 = ssub.s32 %s8, 1
      %s114 = smul.u32 64, %s13
      %p115 = scmp.lt.s32.totalorder %s114, 255
      %s116 = scalar_select %p115, %s114, 255
      %s117 = smul.addr %s116, 8
      %s118 = scalar_lea.vmem %s0, %s117
      %p119 = pneg %p34
      %p120 = pneg %p31
      %p121 = pneg %p55
      %p122 = pneg %p52
      %p123 = pneg %p76
      %p124 = pneg %p73
      %s125 = smul.u32 64, %s13
      %p126 = scmp.lt.s32.totalorder %s125, 255
      %s127 = scalar_select %p126, %s125, 255
      %s128 = smul.addr %s127, 8
      %s129 = scalar_lea.vmem %s0, %s128
      %s130 = smul.u32 64, %s13
      %p132 = scmp.eq.s32.totalorder %s13, 0
      // Predicated region
      $region29: #{conv1d_softmax_etm.2} parent=27 // pred_check
        %p133 = pneg %p132
      $region30: #{conv1d_softmax_etm.2} parent=27 // pred_check_branch
        %135 = sbr.rel (%p133) target = $region32
      $region31: #{conv1d_softmax_etm.2} parent=27 // pred_region
        %vm136 = vcmask 122880
        %137 = vst.msk [vmem:[#allocation2] sm:$0x1] %vm136, -inf
        %138 = vst.msk [vmem:[#allocation3] sm:$0x1] %vm136, 0.0
      $region32: #{conv1d_softmax_etm.2} parent=27 // pred_fallthru
        _
      %v139 = vld [vmem:[%s129] sm:$0xff]
      %v140 = vld [vmem:[%s129 + $0x8] sm:$0xff]
      %v141 = vld [vmem:[%s129 + $0x10] sm:$0xff]
      %v142 = vld [vmem:[%s129 + $0x18] sm:$0xff]
      %v143 = vld [vmem:[%s129 + $0x20] sm:$0xff]
      %v144 = vld [vmem:[%s129 + $0x28] sm:$0xff]
      %v145 = vld [vmem:[%s129 + $0x30] sm:$0xff]
      %v146 = vld [vmem:[%s129 + $0x38] sm:$0xff]
      %v147 = vld [vmem:[%s129 + $0x40] sm:$0xff]
      %v148 = vld [vmem:[%s129 + $0x48] sm:$0xff]
      %v149 = vld [vmem:[%s129 + $0x50] sm:$0xff]
      %v150 = vld [vmem:[%s129 + $0x58] sm:$0xff]
      %v151 = vld [vmem:[%s129 + $0x60] sm:$0xff]
      %v152 = vld [vmem:[%s129 + $0x68] sm:$0xff]
      %v153 = vld [vmem:[%s129 + $0x70] sm:$0xff]
      %v154 = vld [vmem:[%s129 + $0x78] sm:$0xff]
      %v155 = vld [vmem:[%s129 + $0x80] sm:$0xff]
      %v156 = vld [vmem:[%s129 + $0x88] sm:$0xff]
      %v157 = vld [vmem:[%s129 + $0x90] sm:$0xff]
      %v158 = vld [vmem:[%s129 + $0x98] sm:$0xff]
      %v159 = vld [vmem:[%s129 + $0xa0] sm:$0xff]
      %v160 = vld [vmem:[%s129 + $0xa8] sm:$0xff]
      %v161 = vld [vmem:[%s129 + $0xb0] sm:$0xff]
      %v162 = vld [vmem:[%s129 + $0xb8] sm:$0xff]
      %v163 = vld [vmem:[%s129 + $0xc0] sm:$0xff]
      %v164 = vld [vmem:[%s129 + $0xc8] sm:$0xff]
      %v165 = vld [vmem:[%s129 + $0xd0] sm:$0xff]
      %v166 = vld [vmem:[%s129 + $0xd8] sm:$0xff]
      %v167 = vld [vmem:[%s129 + $0xe0] sm:$0xff]
      %v168 = vld [vmem:[%s129 + $0xe8] sm:$0xff]
      %v169 = vld [vmem:[%s129 + $0xf0] sm:$0xff]
      %v170 = vld [vmem:[%s129 + $0xf8] sm:$0xff]
      %v171 = vld [vmem:[%s129 + $0x100] sm:$0xff]
      %v172 = vld [vmem:[%s129 + $0x108] sm:$0xff]
      %v173 = vld [vmem:[%s129 + $0x110] sm:$0xff]
      %v174 = vld [vmem:[%s129 + $0x118] sm:$0xff]
      %v175 = vld [vmem:[%s129 + $0x120] sm:$0xff]
      %v176 = vld [vmem:[%s129 + $0x128] sm:$0xff]
      %v177 = vld [vmem:[%s129 + $0x130] sm:$0xff]
      %v178 = vld [vmem:[%s129 + $0x138] sm:$0xff]
      %v179 = vld [vmem:[%s129 + $0x140] sm:$0xff]
      %v180 = vld [vmem:[%s129 + $0x148] sm:$0xff]
      %v181 = vld [vmem:[%s129 + $0x150] sm:$0xff]
      %v182 = vld [vmem:[%s129 + $0x158] sm:$0xff]
      %v183 = vld [vmem:[%s129 + $0x160] sm:$0xff]
      %v184 = vld [vmem:[%s129 + $0x168] sm:$0xff]
      %v185 = vld [vmem:[%s129 + $0x170] sm:$0xff]
      %v186 = vld [vmem:[%s129 + $0x178] sm:$0xff]
      %v187 = vld [vmem:[%s129 + $0x180] sm:$0xff]
      %v188 = vld [vmem:[%s129 + $0x188] sm:$0xff]
      %v189 = vld [vmem:[%s129 + $0x190] sm:$0xff]
      %v190 = vld [vmem:[%s129 + $0x198] sm:$0xff]
      %v191 = vld [vmem:[%s129 + $0x1a0] sm:$0xff]
      %v192 = vld [vmem:[%s129 + $0x1a8] sm:$0xff]
      %v193 = vld [vmem:[%s129 + $0x1b0] sm:$0xff]
      %v194 = vld [vmem:[%s129 + $0x1b8] sm:$0xff]
      %v195 = vld [vmem:[%s129 + $0x1c0] sm:$0xff]
      %v196 = vld [vmem:[%s129 + $0x1c8] sm:$0xff]
      %v197 = vld [vmem:[%s129 + $0x1d0] sm:$0xff]
      %v198 = vld [vmem:[%s129 + $0x1d8] sm:$0xff]
      %v199 = vld [vmem:[%s129 + $0x1e0] sm:$0xff]
      %v200 = vld [vmem:[%s129 + $0x1e8] sm:$0xff]
      %v201 = vld [vmem:[%s129 + $0x1f0] sm:$0xff]
      %v202 = vld [vmem:[%s129 + $0x1f8] sm:$0xff]
      %v203 = vpack.c.bf16 %v140, %v139
      %v204 = vpack.c.bf16 %v142, %v141
      %v205 = vpack.c.bf16 %v144, %v143
      %v206 = vpack.c.bf16 %v146, %v145
      %v207 = vpack.c.bf16 %v148, %v147
      %v208 = vpack.c.bf16 %v150, %v149
      %v209 = vpack.c.bf16 %v152, %v151
      %v210 = vpack.c.bf16 %v154, %v153
      %v211 = vpack.c.bf16 %v156, %v155
      %v212 = vpack.c.bf16 %v158, %v157
      %v213 = vpack.c.bf16 %v160, %v159
      %v214 = vpack.c.bf16 %v162, %v161
      %v215 = vpack.c.bf16 %v164, %v163
      %v216 = vpack.c.bf16 %v166, %v165
      %v217 = vpack.c.bf16 %v168, %v167
      %v218 = vpack.c.bf16 %v170, %v169
      %v219 = vpack.c.bf16 %v172, %v171
      %v220 = vpack.c.bf16 %v174, %v173
      %v221 = vpack.c.bf16 %v176, %v175
      %v222 = vpack.c.bf16 %v178, %v177
      %v223 = vpack.c.bf16 %v180, %v179
      %v224 = vpack.c.bf16 %v182, %v181
      %v225 = vpack.c.bf16 %v184, %v183
      %v226 = vpack.c.bf16 %v186, %v185
      %v227 = vpack.c.bf16 %v188, %v187
      %v228 = vpack.c.bf16 %v190, %v189
      %v229 = vpack.c.bf16 %v192, %v191
      %v230 = vpack.c.bf16 %v194, %v193
      %v231 = vpack.c.bf16 %v196, %v195
      %v232 = vpack.c.bf16 %v198, %v197
      %v233 = vpack.c.bf16 %v200, %v199
      %v234 = vpack.c.bf16 %v202, %v201
      %v235 = vld [vmem:[%s1] sm:$0xff]
      %v236 = vld [vmem:[%s1 + $0x8] sm:$0xff]
      %v237 = vpack.c.bf16 %v236, %v235
      %vm238 = vcmask 261120
      %v240 = vsel %vm238, %v203, 0
      %v243 = vsel %vm238, %v204, 0
      %v246 = vsel %vm238, %v205, 0
      %v249 = vsel %vm238, %v206, 0
      %v252 = vsel %vm238, %v207, 0
      %v255 = vsel %vm238, %v208, 0
      %v258 = vsel %vm238, %v209, 0
      %v261 = vsel %vm238, %v210, 0
      %v264 = vsel %vm238, %v211, 0
      %v267 = vsel %vm238, %v212, 0
      %v270 = vsel %vm238, %v213, 0
      %v273 = vsel %vm238, %v214, 0
      %v276 = vsel %vm238, %v215, 0
      %v279 = vsel %vm238, %v216, 0
      %v282 = vsel %vm238, %v217, 0
      %v285 = vsel %vm238, %v218, 0
      %v288 = vsel %vm238, %v219, 0
      %v291 = vsel %vm238, %v220, 0
      %v294 = vsel %vm238, %v221, 0
      %v297 = vsel %vm238, %v222, 0
      %v300 = vsel %vm238, %v223, 0
      %v303 = vsel %vm238, %v224, 0
      %v306 = vsel %vm238, %v225, 0
      %v309 = vsel %vm238, %v226, 0
      %v312 = vsel %vm238, %v227, 0
      %v315 = vsel %vm238, %v228, 0
      %v318 = vsel %vm238, %v229, 0
      %v321 = vsel %vm238, %v230, 0
      %v324 = vsel %vm238, %v231, 0
      %v327 = vsel %vm238, %v232, 0
      %v330 = vsel %vm238, %v233, 0
      %v333 = vsel %vm238, %v234, 0
      %v336 = vsel %vm238, %v237, 0
      %338 = vmatprep.subr.bf16.mxu0 0
      %339 = vmatpush1.bf16.xpose.msra.mxu0 0
      %340 = vmatprep.subr.bf16.mxu0 0
      %341 = vmatpush1.bf16.xpose.msra.mxu0 0
      %342 = vmatprep.subr.bf16.mxu0 0
      %343 = vmatpush1.bf16.xpose.msra.mxu0 0
      %344 = vmatprep.subr.bf16.mxu0 0
      %345 = vmatpush1.bf16.xpose.msra.mxu0 0
      %346 = vmatprep.subr.bf16.mxu0 0
      %347 = vmatpush1.bf16.xpose.msra.mxu0 0
      %348 = vmatprep.subr.bf16.mxu0 0
      %349 = vmatpush1.bf16.xpose.msra.mxu0 0
      %350 = vmatprep.subr.bf16.mxu0 0
      %351 = vmatpush1.bf16.xpose.msra.mxu0 0
      %352 = vmatprep.subr.bf16.mxu0 0
      %353 = vmatpush1.bf16.xpose.msra.mxu0 %v336
      %354 = vmatprep.subr.bf16.mxu0 0
      %355 = vmatpush2.bf16.xpose.msra.mxu0 0
      %356 = vmatprep.subr.bf16.mxu0 0
      %357 = vmatpush2.bf16.xpose.msra.mxu0 0
      %358 = vmatprep.subr.bf16.mxu0 0
      %359 = vmatpush2.bf16.xpose.msra.mxu0 0
      %360 = vmatprep.subr.bf16.mxu0 0
      %361 = vmatpush2.bf16.xpose.msra.mxu0 0
      %362 = vmatprep.subr.bf16.mxu0 0
      %363 = vmatpush2.bf16.xpose.msra.mxu0 0
      %364 = vmatprep.subr.bf16.mxu0 0
      %365 = vmatpush2.bf16.xpose.msra.mxu0 0
      %366 = vmatprep.subr.bf16.mxu0 0
      %367 = vmatpush2.bf16.xpose.msra.mxu0 0
      %368 = vmatprep.subr.bf16.mxu0 0
      %369 = vmatpush2.bf16.xpose.msra.mxu0 0
      %370 = vmatprep.mubr.bf16.mxu0 0
      %371 = vmatmul.mubr.bf16.gmra.mxu0 %v240
      %v372 = vpop.f32.mrf.mxu0
      %v373 = vadd.f32 0.0, %v372
      %v374 = vpop.f32.mrf.mxu0
      %v375 = vpop.f32.mrf.mxu0
      %v376 = vadd.f32 0.0, %v375
      %v377 = vpop.f32.mrf.mxu0
      %378 = vmatprep.mubr.bf16.mxu0 0
      %379 = vmatmul.mubr.bf16.gmra.mxu0 %v243
      %v380 = vpop.f32.mrf.mxu0
      %v381 = vadd.f32 0.0, %v380
      %v382 = vpop.f32.mrf.mxu0
      %v383 = vpop.f32.mrf.mxu0
      %v384 = vadd.f32 0.0, %v383
      %v385 = vpop.f32.mrf.mxu0
      %386 = vmatprep.mubr.bf16.mxu0 0
      %387 = vmatmul.mubr.bf16.gmra.mxu0 %v246
      %v388 = vpop.f32.mrf.mxu0
      %v389 = vadd.f32 0.0, %v388
      %v390 = vpop.f32.mrf.mxu0
      %v391 = vpop.f32.mrf.mxu0
      %v392 = vadd.f32 0.0, %v391
      %v393 = vpop.f32.mrf.mxu0
      %394 = vmatprep.mubr.bf16.mxu0 0
      %395 = vmatmul.mubr.bf16.gmra.mxu0 %v249
      %v396 = vpop.f32.mrf.mxu0
      %v397 = vadd.f32 0.0, %v396
      %v398 = vpop.f32.mrf.mxu0
      %v399 = vpop.f32.mrf.mxu0
      %v400 = vadd.f32 0.0, %v399
      %v401 = vpop.f32.mrf.mxu0
      %402 = vmatprep.mubr.bf16.mxu0 0
      %403 = vmatmul.mubr.bf16.gmra.mxu0 %v252
      %v404 = vpop.f32.mrf.mxu0
      %v405 = vadd.f32 0.0, %v404
      %v406 = vpop.f32.mrf.mxu0
      %v407 = vpop.f32.mrf.mxu0
      %v408 = vadd.f32 0.0, %v407
      %v409 = vpop.f32.mrf.mxu0
      %410 = vmatprep.mubr.bf16.mxu0 0
      %411 = vmatmul.mubr.bf16.gmra.mxu0 %v255
      %v412 = vpop.f32.mrf.mxu0
      %v413 = vadd.f32 0.0, %v412
      %v414 = vpop.f32.mrf.mxu0
      %v415 = vpop.f32.mrf.mxu0
      %v416 = vadd.f32 0.0, %v415
      %v417 = vpop.f32.mrf.mxu0
      %418 = vmatprep.mubr.bf16.mxu0 0
      %419 = vmatmul.mubr.bf16.gmra.mxu0 %v258
      %v420 = vpop.f32.mrf.mxu0
      %v421 = vadd.f32 0.0, %v420
      %v422 = vpop.f32.mrf.mxu0
      %v423 = vpop.f32.mrf.mxu0
      %v424 = vadd.f32 0.0, %v423
      %v425 = vpop.f32.mrf.mxu0
      %426 = vmatprep.mubr.bf16.mxu0 0
      %427 = vmatmul.mubr.bf16.gmra.mxu0 %v261
      %v428 = vpop.f32.mrf.mxu0
      %v429 = vadd.f32 0.0, %v428
      %v430 = vpop.f32.mrf.mxu0
      %v431 = vpop.f32.mrf.mxu0
      %v432 = vadd.f32 0.0, %v431
      %v433 = vpop.f32.mrf.mxu0
      %434 = vmatprep.mubr.bf16.mxu0 0
      %435 = vmatmul.mubr.bf16.gmra.mxu0 %v264
      %v436 = vpop.f32.mrf.mxu0
      %v437 = vadd.f32 0.0, %v436
      %v438 = vpop.f32.mrf.mxu0
      %v439 = vpop.f32.mrf.mxu0
      %v440 = vadd.f32 0.0, %v439
      %v441 = vpop.f32.mrf.mxu0
      %442 = vmatprep.mubr.bf16.mxu0 0
      %443 = vmatmul.mubr.bf16.gmra.mxu0 %v267
      %v444 = vpop.f32.mrf.mxu0
      %v445 = vadd.f32 0.0, %v444
      %v446 = vpop.f32.mrf.mxu0
      %v447 = vpop.f32.mrf.mxu0
      %v448 = vadd.f32 0.0, %v447
      %v449 = vpop.f32.mrf.mxu0
      %450 = vmatprep.mubr.bf16.mxu0 0
      %451 = vmatmul.mubr.bf16.gmra.mxu0 %v270
      %v452 = vpop.f32.mrf.mxu0
      %v453 = vadd.f32 0.0, %v452
      %v454 = vpop.f32.mrf.mxu0
      %v455 = vpop.f32.mrf.mxu0
      %v456 = vadd.f32 0.0, %v455
      %v457 = vpop.f32.mrf.mxu0
      %458 = vmatprep.mubr.bf16.mxu0 0
      %459 = vmatmul.mubr.bf16.gmra.mxu0 %v273
      %v460 = vpop.f32.mrf.mxu0
      %v461 = vadd.f32 0.0, %v460
      %v462 = vpop.f32.mrf.mxu0
      %v463 = vpop.f32.mrf.mxu0
      %v464 = vadd.f32 0.0, %v463
      %v465 = vpop.f32.mrf.mxu0
      %466 = vmatprep.mubr.bf16.mxu0 0
      %467 = vmatmul.mubr.bf16.gmra.mxu0 %v276
      %v468 = vpop.f32.mrf.mxu0
      %v469 = vadd.f32 0.0, %v468
      %v470 = vpop.f32.mrf.mxu0
      %v471 = vpop.f32.mrf.mxu0
      %v472 = vadd.f32 0.0, %v471
      %v473 = vpop.f32.mrf.mxu0
      %474 = vmatprep.mubr.bf16.mxu0 0
      %475 = vmatmul.mubr.bf16.gmra.mxu0 %v279
      %v476 = vpop.f32.mrf.mxu0
      %v477 = vadd.f32 0.0, %v476
      %v478 = vpop.f32.mrf.mxu0
      %v479 = vpop.f32.mrf.mxu0
      %v480 = vadd.f32 0.0, %v479
      %v481 = vpop.f32.mrf.mxu0
      %482 = vmatprep.mubr.bf16.mxu0 0
      %483 = vmatmul.mubr.bf16.gmra.mxu0 %v282
      %v484 = vpop.f32.mrf.mxu0
      %v485 = vadd.f32 0.0, %v484
      %v486 = vpop.f32.mrf.mxu0
      %v487 = vpop.f32.mrf.mxu0
      %v488 = vadd.f32 0.0, %v487
      %v489 = vpop.f32.mrf.mxu0
      %490 = vmatprep.mubr.bf16.mxu0 0
      %491 = vmatmul.mubr.bf16.gmra.mxu0 %v285
      %v492 = vpop.f32.mrf.mxu0
      %v493 = vadd.f32 0.0, %v492
      %v494 = vpop.f32.mrf.mxu0
      %v495 = vpop.f32.mrf.mxu0
      %v496 = vadd.f32 0.0, %v495
      %v497 = vpop.f32.mrf.mxu0
      %498 = vmatprep.mubr.bf16.mxu0 0
      %499 = vmatmul.mubr.bf16.gmra.mxu0 %v288
      %v500 = vpop.f32.mrf.mxu0
      %v501 = vadd.f32 0.0, %v500
      %v502 = vpop.f32.mrf.mxu0
      %v503 = vpop.f32.mrf.mxu0
      %v504 = vadd.f32 0.0, %v503
      %v505 = vpop.f32.mrf.mxu0
      %506 = vmatprep.mubr.bf16.mxu0 0
      %507 = vmatmul.mubr.bf16.gmra.mxu0 %v291
      %v508 = vpop.f32.mrf.mxu0
      %v509 = vadd.f32 0.0, %v508
      %v510 = vpop.f32.mrf.mxu0
      %v511 = vpop.f32.mrf.mxu0
      %v512 = vadd.f32 0.0, %v511
      %v513 = vpop.f32.mrf.mxu0
      %514 = vmatprep.mubr.bf16.mxu0 0
      %515 = vmatmul.mubr.bf16.gmra.mxu0 %v294
      %v516 = vpop.f32.mrf.mxu0
      %v517 = vadd.f32 0.0, %v516
      %v518 = vpop.f32.mrf.mxu0
      %v519 = vpop.f32.mrf.mxu0
      %v520 = vadd.f32 0.0, %v519
      %v521 = vpop.f32.mrf.mxu0
      %522 = vmatprep.mubr.bf16.mxu0 0
      %523 = vmatmul.mubr.bf16.gmra.mxu0 %v297
      %v524 = vpop.f32.mrf.mxu0
      %v525 = vadd.f32 0.0, %v524
      %v526 = vpop.f32.mrf.mxu0
      %v527 = vpop.f32.mrf.mxu0
      %v528 = vadd.f32 0.0, %v527
      %v529 = vpop.f32.mrf.mxu0
      %530 = vmatprep.mubr.bf16.mxu0 0
      %531 = vmatmul.mubr.bf16.gmra.mxu0 %v300
      %v532 = vpop.f32.mrf.mxu0
      %v533 = vadd.f32 0.0, %v532
      %v534 = vpop.f32.mrf.mxu0
      %v535 = vpop.f32.mrf.mxu0
      %v536 = vadd.f32 0.0, %v535
      %v537 = vpop.f32.mrf.mxu0
      %538 = vmatprep.mubr.bf16.mxu0 0
      %539 = vmatmul.mubr.bf16.gmra.mxu0 %v303
      %v540 = vpop.f32.mrf.mxu0
      %v541 = vadd.f32 0.0, %v540
      %v542 = vpop.f32.mrf.mxu0
      %v543 = vpop.f32.mrf.mxu0
      %v544 = vadd.f32 0.0, %v543
      %v545 = vpop.f32.mrf.mxu0
      %546 = vmatprep.mubr.bf16.mxu0 0
      %547 = vmatmul.mubr.bf16.gmra.mxu0 %v306
      %v548 = vpop.f32.mrf.mxu0
      %v549 = vadd.f32 0.0, %v548
      %v550 = vpop.f32.mrf.mxu0
      %v551 = vpop.f32.mrf.mxu0
      %v552 = vadd.f32 0.0, %v551
      %v553 = vpop.f32.mrf.mxu0
      %554 = vmatprep.mubr.bf16.mxu0 0
      %555 = vmatmul.mubr.bf16.gmra.mxu0 %v309
      %v556 = vpop.f32.mrf.mxu0
      %v557 = vadd.f32 0.0, %v556
      %v558 = vpop.f32.mrf.mxu0
      %v559 = vpop.f32.mrf.mxu0
      %v560 = vadd.f32 0.0, %v559
      %v561 = vpop.f32.mrf.mxu0
      %562 = vmatprep.mubr.bf16.mxu0 0
      %563 = vmatmul.mubr.bf16.gmra.mxu0 %v312
      %v564 = vpop.f32.mrf.mxu0
      %v565 = vadd.f32 0.0, %v564
      %v566 = vpop.f32.mrf.mxu0
      %v567 = vpop.f32.mrf.mxu0
      %v568 = vadd.f32 0.0, %v567
      %v569 = vpop.f32.mrf.mxu0
      %570 = vmatprep.mubr.bf16.mxu0 0
      %571 = vmatmul.mubr.bf16.gmra.mxu0 %v315
      %v572 = vpop.f32.mrf.mxu0
      %v573 = vadd.f32 0.0, %v572
      %v574 = vpop.f32.mrf.mxu0
      %v575 = vpop.f32.mrf.mxu0
      %v576 = vadd.f32 0.0, %v575
      %v577 = vpop.f32.mrf.mxu0
      %578 = vmatprep.mubr.bf16.mxu0 0
      %579 = vmatmul.mubr.bf16.gmra.mxu0 %v318
      %v580 = vpop.f32.mrf.mxu0
      %v581 = vadd.f32 0.0, %v580
      %v582 = vpop.f32.mrf.mxu0
      %v583 = vpop.f32.mrf.mxu0
      %v584 = vadd.f32 0.0, %v583
      %v585 = vpop.f32.mrf.mxu0
      %586 = vmatprep.mubr.bf16.mxu0 0
      %587 = vmatmul.mubr.bf16.gmra.mxu0 %v321
      %v588 = vpop.f32.mrf.mxu0
      %v589 = vadd.f32 0.0, %v588
      %v590 = vpop.f32.mrf.mxu0
      %v591 = vpop.f32.mrf.mxu0
      %v592 = vadd.f32 0.0, %v591
      %v593 = vpop.f32.mrf.mxu0
      %594 = vmatprep.mubr.bf16.mxu0 0
      %595 = vmatmul.mubr.bf16.gmra.mxu0 %v324
      %v596 = vpop.f32.mrf.mxu0
      %v597 = vadd.f32 0.0, %v596
      %v598 = vpop.f32.mrf.mxu0
      %v599 = vpop.f32.mrf.mxu0
      %v600 = vadd.f32 0.0, %v599
      %v601 = vpop.f32.mrf.mxu0
      %602 = vmatprep.mubr.bf16.mxu0 0
      %603 = vmatmul.mubr.bf16.gmra.mxu0 %v327
      %v604 = vpop.f32.mrf.mxu0
      %v605 = vadd.f32 0.0, %v604
      %v606 = vpop.f32.mrf.mxu0
      %v607 = vpop.f32.mrf.mxu0
      %v608 = vadd.f32 0.0, %v607
      %v609 = vpop.f32.mrf.mxu0
      %610 = vmatprep.mubr.bf16.mxu0 0
      %611 = vmatmul.mubr.bf16.gmra.mxu0 %v330
      %v612 = vpop.f32.mrf.mxu0
      %v613 = vadd.f32 0.0, %v612
      %v614 = vpop.f32.mrf.mxu0
      %v615 = vpop.f32.mrf.mxu0
      %v616 = vadd.f32 0.0, %v615
      %v617 = vpop.f32.mrf.mxu0
      %618 = vmatprep.mubr.bf16.mxu0 0
      %619 = vmatmul.mubr.bf16.gmra.mxu0 %v333
      %v620 = vpop.f32.mrf.mxu0
      %v621 = vadd.f32 0.0, %v620
      %v622 = vpop.f32.mrf.mxu0
      %v623 = vpop.f32.mrf.mxu0
      %v624 = vadd.f32 0.0, %v623
      %v625 = vpop.f32.mrf.mxu0
      %626 = vdwg.mxu0
      %v627 = vld [vmem:[#allocation2] sm:$0x1]
      %vm628 = vcmask 130048
      %v629 = vsel %vm628, %v373, -inf
      %v630 = vsel %vm628, %v376, -inf
      %v631 = vsel %vm628, %v381, -inf
      %v632 = vsel %vm628, %v384, -inf
      %v633 = vsel %vm628, %v389, -inf
      %v634 = vmax.f32 %v629, %v633
      %v635 = vsel %vm628, %v392, -inf
      %v636 = vmax.f32 %v630, %v635
      %v637 = vsel %vm628, %v397, -inf
      %v638 = vmax.f32 %v631, %v637
      %v639 = vsel %vm628, %v400, -inf
      %v640 = vmax.f32 %v632, %v639
      %v641 = vsel %vm628, %v405, -inf
      %v642 = vmax.f32 %v634, %v641
      %v643 = vsel %vm628, %v408, -inf
      %v644 = vmax.f32 %v636, %v643
      %v645 = vsel %vm628, %v413, -inf
      %v646 = vmax.f32 %v638, %v645
      %v647 = vsel %vm628, %v416, -inf
      %v648 = vmax.f32 %v640, %v647
      %v649 = vsel %vm628, %v421, -inf
      %v650 = vmax.f32 %v642, %v649
      %v651 = vsel %vm628, %v424, -inf
      %v652 = vmax.f32 %v644, %v651
      %v653 = vsel %vm628, %v429, -inf
      %v654 = vmax.f32 %v646, %v653
      %v655 = vsel %vm628, %v432, -inf
      %v656 = vmax.f32 %v648, %v655
      %v657 = vsel %vm628, %v437, -inf
      %v658 = vmax.f32 %v650, %v657
      %v659 = vsel %vm628, %v440, -inf
      %v660 = vmax.f32 %v652, %v659
      %v661 = vsel %vm628, %v445, -inf
      %v662 = vmax.f32 %v654, %v661
      %v663 = vsel %vm628, %v448, -inf
      %v664 = vmax.f32 %v656, %v663
      %v665 = vsel %vm628, %v453, -inf
      %v666 = vmax.f32 %v658, %v665
      %v667 = vsel %vm628, %v456, -inf
      %v668 = vmax.f32 %v660, %v667
      %v669 = vsel %vm628, %v461, -inf
      %v670 = vmax.f32 %v662, %v669
      %v671 = vsel %vm628, %v464, -inf
      %v672 = vmax.f32 %v664, %v671
      %v673 = vsel %vm628, %v469, -inf
      %v674 = vmax.f32 %v666, %v673
      %v675 = vsel %vm628, %v472, -inf
      %v676 = vmax.f32 %v668, %v675
      %v677 = vsel %vm628, %v477, -inf
      %v678 = vmax.f32 %v670, %v677
      %v679 = vsel %vm628, %v480, -inf
      %v680 = vmax.f32 %v672, %v679
      %v681 = vsel %vm628, %v485, -inf
      %v682 = vmax.f32 %v674, %v681
      %v683 = vsel %vm628, %v488, -inf
      %v684 = vmax.f32 %v676, %v683
      %v685 = vsel %vm628, %v493, -inf
      %v686 = vmax.f32 %v678, %v685
      %v687 = vsel %vm628, %v496, -inf
      %v688 = vmax.f32 %v680, %v687
      %v689 = vsel %vm628, %v501, -inf
      %v690 = vmax.f32 %v682, %v689
      %v691 = vsel %vm628, %v504, -inf
      %v692 = vmax.f32 %v684, %v691
      %v693 = vsel %vm628, %v509, -inf
      %v694 = vmax.f32 %v686, %v693
      %v695 = vsel %vm628, %v512, -inf
      %v696 = vmax.f32 %v688, %v695
      %v697 = vsel %vm628, %v517, -inf
      %v698 = vmax.f32 %v690, %v697
      %v699 = vsel %vm628, %v520, -inf
      %v700 = vmax.f32 %v692, %v699
      %v701 = vsel %vm628, %v525, -inf
      %v702 = vmax.f32 %v694, %v701
      %v703 = vsel %vm628, %v528, -inf
      %v704 = vmax.f32 %v696, %v703
      %v705 = vsel %vm628, %v533, -inf
      %v706 = vmax.f32 %v698, %v705
      %v707 = vsel %vm628, %v536, -inf
      %v708 = vmax.f32 %v700, %v707
      %v709 = vsel %vm628, %v541, -inf
      %v710 = vmax.f32 %v702, %v709
      %v711 = vsel %vm628, %v544, -inf
      %v712 = vmax.f32 %v704, %v711
      %v713 = vsel %vm628, %v549, -inf
      %v714 = vmax.f32 %v706, %v713
      %v715 = vsel %vm628, %v552, -inf
      %v716 = vmax.f32 %v708, %v715
      %v717 = vsel %vm628, %v557, -inf
      %v718 = vmax.f32 %v710, %v717
      %v719 = vsel %vm628, %v560, -inf
      %v720 = vmax.f32 %v712, %v719
      %v721 = vsel %vm628, %v565, -inf
      %v722 = vmax.f32 %v714, %v721
      %v723 = vsel %vm628, %v568, -inf
      %v724 = vmax.f32 %v716, %v723
      %v725 = vsel %vm628, %v573, -inf
      %v726 = vmax.f32 %v718, %v725
      %v727 = vsel %vm628, %v576, -inf
      %v728 = vmax.f32 %v720, %v727
      %v729 = vsel %vm628, %v581, -inf
      %v730 = vmax.f32 %v722, %v729
      %v731 = vsel %vm628, %v584, -inf
      %v732 = vmax.f32 %v724, %v731
      %v733 = vsel %vm628, %v589, -inf
      %v734 = vmax.f32 %v726, %v733
      %v735 = vsel %vm628, %v592, -inf
      %v736 = vmax.f32 %v728, %v735
      %v737 = vsel %vm628, %v597, -inf
      %v738 = vmax.f32 %v730, %v737
      %v739 = vsel %vm628, %v600, -inf
      %v740 = vmax.f32 %v732, %v739
      %v741 = vsel %vm628, %v605, -inf
      %v742 = vmax.f32 %v734, %v741
      %v743 = vsel %vm628, %v608, -inf
      %v744 = vmax.f32 %v736, %v743
      %v745 = vsel %vm628, %v613, -inf
      %v746 = vmax.f32 %v738, %v745
      %v747 = vsel %vm628, %v616, -inf
      %v748 = vmax.f32 %v740, %v747
      %v749 = vsel %vm628, %v621, -inf
      %v750 = vmax.f32 %v742, %v749
      %v751 = vsel %vm628, %v624, -inf
      %v752 = vmax.f32 %v744, %v751
      %v753 = vmax.f32 %v746, %v748
      %v754 = vmax.f32 %v750, %v752
      %v755 = vmax.f32 %v753, %v754
      %v756 = vrot.slane %v755, 4
      %v757 = vmax.f32 %v755, %v756
      %v758 = vrot.slane %v757, 2
      %v759 = vmax.f32 %v757, %v758
      %v760 = vrot.slane %v759, 1
      %v761 = vmax.f32 %v759, %v760
      %v762 = vmax.f32 %v627, %v761
      %v763 = vld [vmem:[#allocation3] sm:$0x1]
      %v764 = vsub.f32 %v627, %v762
      %v765 = vmul.f32 %v764, 1.442695
      %v766 = vpow.pop %v765
      %v767 = vmul.f32 %v763, %v766
      %v769 = vlaneseq
      %v770 = vshrl.u32 %v769, 7
      %v771 = vsub.s32 0, %v770
      %v772 = vrot.slane %v762, %v771
      %v774 = vsub.f32 %v373, %v772
      %v775 = vsub.f32 %v376, %v772
      %v776 = vsub.f32 %v381, %v772
      %v777 = vsub.f32 %v384, %v772
      %v778 = vsub.f32 %v389, %v772
      %v779 = vsub.f32 %v392, %v772
      %v780 = vsub.f32 %v397, %v772
      %v781 = vsub.f32 %v400, %v772
      %v782 = vsub.f32 %v405, %v772
      %v783 = vsub.f32 %v408, %v772
      %v784 = vsub.f32 %v413, %v772
      %v785 = vsub.f32 %v416, %v772
      %v786 = vsub.f32 %v421, %v772
      %v787 = vsub.f32 %v424, %v772
      %v788 = vsub.f32 %v429, %v772
      %v789 = vsub.f32 %v432, %v772
      %v790 = vsub.f32 %v437, %v772
      %v791 = vsub.f32 %v440, %v772
      %v792 = vsub.f32 %v445, %v772
      %v793 = vsub.f32 %v448, %v772
      %v794 = vsub.f32 %v453, %v772
      %v795 = vsub.f32 %v456, %v772
      %v796 = vsub.f32 %v461, %v772
      %v797 = vsub.f32 %v464, %v772
      %v798 = vsub.f32 %v469, %v772
      %v799 = vsub.f32 %v472, %v772
      %v800 = vsub.f32 %v477, %v772
      %v801 = vsub.f32 %v480, %v772
      %v802 = vsub.f32 %v485, %v772
      %v803 = vsub.f32 %v488, %v772
      %v804 = vsub.f32 %v493, %v772
      %v805 = vsub.f32 %v496, %v772
      %v806 = vsub.f32 %v501, %v772
      %v807 = vsub.f32 %v504, %v772
      %v808 = vsub.f32 %v509, %v772
      %v809 = vsub.f32 %v512, %v772
      %v810 = vsub.f32 %v517, %v772
      %v811 = vsub.f32 %v520, %v772
      %v812 = vsub.f32 %v525, %v772
      %v813 = vsub.f32 %v528, %v772
      %v814 = vsub.f32 %v533, %v772
      %v815 = vsub.f32 %v536, %v772
      %v816 = vsub.f32 %v541, %v772
      %v817 = vsub.f32 %v544, %v772
      %v818 = vsub.f32 %v549, %v772
      %v819 = vsub.f32 %v552, %v772
      %v820 = vsub.f32 %v557, %v772
      %v821 = vsub.f32 %v560, %v772
      %v822 = vsub.f32 %v565, %v772
      %v823 = vsub.f32 %v568, %v772
      %v824 = vsub.f32 %v573, %v772
      %v825 = vsub.f32 %v576, %v772
      %v826 = vsub.f32 %v581, %v772
      %v827 = vsub.f32 %v584, %v772
      %v828 = vsub.f32 %v589, %v772
      %v829 = vsub.f32 %v592, %v772
      %v830 = vsub.f32 %v597, %v772
      %v831 = vsub.f32 %v600, %v772
      %v832 = vsub.f32 %v605, %v772
      %v833 = vsub.f32 %v608, %v772
      %v834 = vsub.f32 %v613, %v772
      %v835 = vsub.f32 %v616, %v772
      %v836 = vsub.f32 %v621, %v772
      %v837 = vsub.f32 %v624, %v772
      %v838 = vmul.f32 %v774, 1.442695
      %v839 = vpow.pop %v838
      %v840 = vmul.f32 %v775, 1.442695
      %v841 = vpow.pop %v840
      %v842 = vmul.f32 %v776, 1.442695
      %v843 = vpow.pop %v842
      %v844 = vmul.f32 %v777, 1.442695
      %v845 = vpow.pop %v844
      %v846 = vmul.f32 %v778, 1.442695
      %v847 = vpow.pop %v846
      %v848 = vmul.f32 %v779, 1.442695
      %v849 = vpow.pop %v848
      %v850 = vmul.f32 %v780, 1.442695
      %v851 = vpow.pop %v850
      %v852 = vmul.f32 %v781, 1.442695
      %v853 = vpow.pop %v852
      %v854 = vmul.f32 %v782, 1.442695
      %v855 = vpow.pop %v854
      %v856 = vmul.f32 %v783, 1.442695
      %v857 = vpow.pop %v856
      %v858 = vmul.f32 %v784, 1.442695
      %v859 = vpow.pop %v858
      %v860 = vmul.f32 %v785, 1.442695
      %v861 = vpow.pop %v860
      %v862 = vmul.f32 %v786, 1.442695
      %v863 = vpow.pop %v862
      %v864 = vmul.f32 %v787, 1.442695
      %v865 = vpow.pop %v864
      %v866 = vmul.f32 %v788, 1.442695
      %v867 = vpow.pop %v866
      %v868 = vmul.f32 %v789, 1.442695
      %v869 = vpow.pop %v868
      %v870 = vmul.f32 %v790, 1.442695
      %v871 = vpow.pop %v870
      %v872 = vmul.f32 %v791, 1.442695
      %v873 = vpow.pop %v872
      %v874 = vmul.f32 %v792, 1.442695
      %v875 = vpow.pop %v874
      %v876 = vmul.f32 %v793, 1.442695
      %v877 = vpow.pop %v876
      %v878 = vmul.f32 %v794, 1.442695
      %v879 = vpow.pop %v878
      %v880 = vmul.f32 %v795, 1.442695
      %v881 = vpow.pop %v880
      %v882 = vmul.f32 %v796, 1.442695
      %v883 = vpow.pop %v882
      %v884 = vmul.f32 %v797, 1.442695
      %v885 = vpow.pop %v884
      %v886 = vmul.f32 %v798, 1.442695
      %v887 = vpow.pop %v886
      %v888 = vmul.f32 %v799, 1.442695
      %v889 = vpow.pop %v888
      %v890 = vmul.f32 %v800, 1.442695
      %v891 = vpow.pop %v890
      %v892 = vmul.f32 %v801, 1.442695
      %v893 = vpow.pop %v892
      %v894 = vmul.f32 %v802, 1.442695
      %v895 = vpow.pop %v894
      %v896 = vmul.f32 %v803, 1.442695
      %v897 = vpow.pop %v896
      %v898 = vmul.f32 %v804, 1.442695
      %v899 = vpow.pop %v898
      %v900 = vmul.f32 %v805, 1.442695
      %v901 = vpow.pop %v900
      %v902 = vmul.f32 %v806, 1.442695
      %v903 = vpow.pop %v902
      %v904 = vmul.f32 %v807, 1.442695
      %v905 = vpow.pop %v904
      %v906 = vmul.f32 %v808, 1.442695
      %v907 = vpow.pop %v906
      %v908 = vmul.f32 %v809, 1.442695
      %v909 = vpow.pop %v908
      %v910 = vmul.f32 %v810, 1.442695
      %v911 = vpow.pop %v910
      %v912 = vmul.f32 %v811, 1.442695
      %v913 = vpow.pop %v912
      %v914 = vmul.f32 %v812, 1.442695
      %v915 = vpow.pop %v914
      %v916 = vmul.f32 %v813, 1.442695
      %v917 = vpow.pop %v916
      %v918 = vmul.f32 %v814, 1.442695
      %v919 = vpow.pop %v918
      %v920 = vmul.f32 %v815, 1.442695
      %v921 = vpow.pop %v920
      %v922 = vmul.f32 %v816, 1.442695
      %v923 = vpow.pop %v922
      %v924 = vmul.f32 %v817, 1.442695
      %v925 = vpow.pop %v924
      %v926 = vmul.f32 %v818, 1.442695
      %v927 = vpow.pop %v926
      %v928 = vmul.f32 %v819, 1.442695
      %v929 = vpow.pop %v928
      %v930 = vmul.f32 %v820, 1.442695
      %v931 = vpow.pop %v930
      %v932 = vmul.f32 %v821, 1.442695
      %v933 = vpow.pop %v932
      %v934 = vmul.f32 %v822, 1.442695
      %v935 = vpow.pop %v934
      %v936 = vmul.f32 %v823, 1.442695
      %v937 = vpow.pop %v936
      %v938 = vmul.f32 %v824, 1.442695
      %v939 = vpow.pop %v938
      %v940 = vmul.f32 %v825, 1.442695
      %v941 = vpow.pop %v940
      %v942 = vmul.f32 %v826, 1.442695
      %v943 = vpow.pop %v942
      %v944 = vmul.f32 %v827, 1.442695
      %v945 = vpow.pop %v944
      %v946 = vmul.f32 %v828, 1.442695
      %v947 = vpow.pop %v946
      %v948 = vmul.f32 %v829, 1.442695
      %v949 = vpow.pop %v948
      %v950 = vmul.f32 %v830, 1.442695
      %v951 = vpow.pop %v950
      %v952 = vmul.f32 %v831, 1.442695
      %v953 = vpow.pop %v952
      %v954 = vmul.f32 %v832, 1.442695
      %v955 = vpow.pop %v954
      %v956 = vmul.f32 %v833, 1.442695
      %v957 = vpow.pop %v956
      %v958 = vmul.f32 %v834, 1.442695
      %v959 = vpow.pop %v958
      %v960 = vmul.f32 %v835, 1.442695
      %v961 = vpow.pop %v960
      %v962 = vmul.f32 %v836, 1.442695
      %v963 = vpow.pop %v962
      %v964 = vmul.f32 %v837, 1.442695
      %v965 = vpow.pop %v964
      %v966 = vsel %vm628, %v839, 0.0
      %v967 = vsel %vm628, %v841, 0.0
      %v968 = vadd.f32 %v966, %v967
      %v969 = vsel %vm628, %v843, 0.0
      %v970 = vadd.f32 %v968, %v969
      %v971 = vsel %vm628, %v845, 0.0
      %v972 = vadd.f32 %v970, %v971
      %v973 = vsel %vm628, %v847, 0.0
      %v974 = vadd.f32 %v972, %v973
      %v975 = vsel %vm628, %v849, 0.0
      %v976 = vadd.f32 %v974, %v975
      %v977 = vsel %vm628, %v851, 0.0
      %v978 = vadd.f32 %v976, %v977
      %v979 = vsel %vm628, %v853, 0.0
      %v980 = vadd.f32 %v978, %v979
      %v981 = vsel %vm628, %v855, 0.0
      %v982 = vadd.f32 %v980, %v981
      %v983 = vsel %vm628, %v857, 0.0
      %v984 = vadd.f32 %v982, %v983
      %v985 = vsel %vm628, %v859, 0.0
      %v986 = vadd.f32 %v984, %v985
      %v987 = vsel %vm628, %v861, 0.0
      %v988 = vadd.f32 %v986, %v987
      %v989 = vsel %vm628, %v863, 0.0
      %v990 = vadd.f32 %v988, %v989
      %v991 = vsel %vm628, %v865, 0.0
      %v992 = vadd.f32 %v990, %v991
      %v993 = vsel %vm628, %v867, 0.0
      %v994 = vadd.f32 %v992, %v993
      %v995 = vsel %vm628, %v869, 0.0
      %v996 = vadd.f32 %v994, %v995
      %v997 = vsel %vm628, %v871, 0.0
      %v998 = vadd.f32 %v996, %v997
      %v999 = vsel %vm628, %v873, 0.0
      %v1000 = vadd.f32 %v998, %v999
      %v1001 = vsel %vm628, %v875, 0.0
      %v1002 = vadd.f32 %v1000, %v1001
      %v1003 = vsel %vm628, %v877, 0.0
      %v1004 = vadd.f32 %v1002, %v1003
      %v1005 = vsel %vm628, %v879, 0.0
      %v1006 = vadd.f32 %v1004, %v1005
      %v1007 = vsel %vm628, %v881, 0.0
      %v1008 = vadd.f32 %v1006, %v1007
      %v1009 = vsel %vm628, %v883, 0.0
      %v1010 = vadd.f32 %v1008, %v1009
      %v1011 = vsel %vm628, %v885, 0.0
      %v1012 = vadd.f32 %v1010, %v1011
      %v1013 = vsel %vm628, %v887, 0.0
      %v1014 = vadd.f32 %v1012, %v1013
      %v1015 = vsel %vm628, %v889, 0.0
      %v1016 = vadd.f32 %v1014, %v1015
      %v1017 = vsel %vm628, %v891, 0.0
      %v1018 = vadd.f32 %v1016, %v1017
      %v1019 = vsel %vm628, %v893, 0.0
      %v1020 = vadd.f32 %v1018, %v1019
      %v1021 = vsel %vm628, %v895, 0.0
      %v1022 = vadd.f32 %v1020, %v1021
      %v1023 = vsel %vm628, %v897, 0.0
      %v1024 = vadd.f32 %v1022, %v1023
      %v1025 = vsel %vm628, %v899, 0.0
      %v1026 = vadd.f32 %v1024, %v1025
      %v1027 = vsel %vm628, %v901, 0.0
      %v1028 = vadd.f32 %v1026, %v1027
      %v1029 = vsel %vm628, %v903, 0.0
      %v1030 = vadd.f32 %v1028, %v1029
      %v1031 = vsel %vm628, %v905, 0.0
      %v1032 = vadd.f32 %v1030, %v1031
      %v1033 = vsel %vm628, %v907, 0.0
      %v1034 = vadd.f32 %v1032, %v1033
      %v1035 = vsel %vm628, %v909, 0.0
      %v1036 = vadd.f32 %v1034, %v1035
      %v1037 = vsel %vm628, %v911, 0.0
      %v1038 = vadd.f32 %v1036, %v1037
      %v1039 = vsel %vm628, %v913, 0.0
      %v1040 = vadd.f32 %v1038, %v1039
      %v1041 = vsel %vm628, %v915, 0.0
      %v1042 = vadd.f32 %v1040, %v1041
      %v1043 = vsel %vm628, %v917, 0.0
      %v1044 = vadd.f32 %v1042, %v1043
      %v1045 = vsel %vm628, %v919, 0.0
      %v1046 = vadd.f32 %v1044, %v1045
      %v1047 = vsel %vm628, %v921, 0.0
      %v1048 = vadd.f32 %v1046, %v1047
      %v1049 = vsel %vm628, %v923, 0.0
      %v1050 = vadd.f32 %v1048, %v1049
      %v1051 = vsel %vm628, %v925, 0.0
      %v1052 = vadd.f32 %v1050, %v1051
      %v1053 = vsel %vm628, %v927, 0.0
      %v1054 = vadd.f32 %v1052, %v1053
      %v1055 = vsel %vm628, %v929, 0.0
      %v1056 = vadd.f32 %v1054, %v1055
      %v1057 = vsel %vm628, %v931, 0.0
      %v1058 = vadd.f32 %v1056, %v1057
      %v1059 = vsel %vm628, %v933, 0.0
      %v1060 = vadd.f32 %v1058, %v1059
      %v1061 = vsel %vm628, %v935, 0.0
      %v1062 = vadd.f32 %v1060, %v1061
      %v1063 = vsel %vm628, %v937, 0.0
      %v1064 = vadd.f32 %v1062, %v1063
      %v1065 = vsel %vm628, %v939, 0.0
      %v1066 = vadd.f32 %v1064, %v1065
      %v1067 = vsel %vm628, %v941, 0.0
      %v1068 = vadd.f32 %v1066, %v1067
      %v1069 = vsel %vm628, %v943, 0.0
      %v1070 = vadd.f32 %v1068, %v1069
      %v1071 = vsel %vm628, %v945, 0.0
      %v1072 = vadd.f32 %v1070, %v1071
      %v1073 = vsel %vm628, %v947, 0.0
      %v1074 = vadd.f32 %v1072, %v1073
      %v1075 = vsel %vm628, %v949, 0.0
      %v1076 = vadd.f32 %v1074, %v1075
      %v1077 = vsel %vm628, %v951, 0.0
      %v1078 = vadd.f32 %v1076, %v1077
      %v1079 = vsel %vm628, %v953, 0.0
      %v1080 = vadd.f32 %v1078, %v1079
      %v1081 = vsel %vm628, %v955, 0.0
      %v1082 = vadd.f32 %v1080, %v1081
      %v1083 = vsel %vm628, %v957, 0.0
      %v1084 = vadd.f32 %v1082, %v1083
      %v1085 = vsel %vm628, %v959, 0.0
      %v1086 = vadd.f32 %v1084, %v1085
      %v1087 = vsel %vm628, %v961, 0.0
      %v1088 = vadd.f32 %v1086, %v1087
      %v1089 = vsel %vm628, %v963, 0.0
      %v1090 = vadd.f32 %v1088, %v1089
      %v1091 = vsel %vm628, %v965, 0.0
      %v1092 = vadd.f32 %v1090, %v1091
      %v1093 = vrot.slane %v1092, 4
      %v1094 = vadd.f32 %v1092, %v1093
      %v1095 = vrot.slane %v1094, 2
      %v1096 = vadd.f32 %v1094, %v1095
      %v1097 = vrot.slane %v1096, 1
      %v1098 = vadd.f32 %v1096, %v1097
      %v1099 = vadd.f32 %v767, %v1098
      %vm1100 = vcmask 122880
      %1101 = vst.msk [vmem:[#allocation3] sm:$0x1] %vm1100, %v1099
      %1102 = vst.msk [vmem:[#allocation2] sm:$0x1] %vm1100, %v762
      %p1103 = scmp.eq.s32.totalorder %s13, 3
      // Predicated region
      $region33: #{conv1d_softmax_etm.2} parent=27 // pred_check
        %p1104 = pneg %p1103
      $region34: #{conv1d_softmax_etm.2} parent=27 // pred_check_branch
        %1106 = sbr.rel (%p1104) target = $region36
      $region35: #{conv1d_softmax_etm.2} parent=27 // pred_region
        %v1107 = vld [vmem:[#allocation2] sm:$0x1]
        %v1108 = vld [vmem:[#allocation3] sm:$0x1]
        %v1109 = vlog2.pop %v1108
        %v1110 = vmul.f32 %v1109, 0.6931472
        %v1111 = vadd.f32 %v1107, %v1110
        %1112 = vst.msk [vmem:[%s2] sm:$0x1] %vm1100, %v1111
      $region36: #{conv1d_softmax_etm.2} parent=27 // pred_fallthru
        _
      // Predicated region
      $region37: #{conv1d_softmax_etm.2} parent=27 // pred_check
        %p1113 = pneg %p73
      $region38: #{conv1d_softmax_etm.2} parent=27 // pred_check_branch
        %1115 = sbr.rel (%p1113) target = $region40
      $region39: #{conv1d_softmax_etm.2} parent=27 // pred_region
        _
      $region40: #{conv1d_softmax_etm.2} parent=27 // pred_fallthru
        _
      // Predicated region
      $region41: #{conv1d_softmax_etm.2} parent=27 // pred_check
        %p1116 = pneg %p73
      $region42: #{conv1d_softmax_etm.2} parent=27 // pred_check_branch
        %1118 = sbr.rel (%p1116) target = $region44
      $region43: #{conv1d_softmax_etm.2} parent=27 // pred_region
        _
      $region44: #{conv1d_softmax_etm.2} parent=27 // pred_fallthru
        _
    $region28: #{conv1d_softmax_etm.2} parent=5 // pred_fallthru
      _
    %p1119 = scmp.le.s32.totalorder 2, %s8
    // Predicated region
    $region45: #{conv1d_softmax_etm.2} parent=5 // pred_check
      %p1120 = pneg %p1119
    $region46: #{conv1d_softmax_etm.2} parent=5 // pred_check_branch
      %1122 = sbr.rel (%p1120) target = $region48
    $region47: #{conv1d_softmax_etm.2} parent=5 // pred_region
      %s1123 = ssub.s32 %s8, 2
    $region48: #{conv1d_softmax_etm.2} parent=5 // pred_fallthru
      _
  $region6: #{conv1d_softmax_etm.2} parent=0 // loop_footer
    %s12 = sadd.s32 1, %s8
  $region7: #{conv1d_softmax_etm.2} parent=0 // loop_footer_branch
    %7 = sbr.rel target = $region3
  $region8: #{conv1d_softmax_etm.2} parent=0 // loop_exit
    _

// kernel: conv1d_softmax_etm.3
$region0: #{conv1d_softmax_etm.3}
  #allocation0 [shape = 'u32[]', space=smem, size = 0x4, offset = 0x4, fixed_abs, tag = 'smem constant byte address 0x4 - core index']
  #allocation1 [shape = 'u32[144,128]{1,0:T(1,128)}', space=vmem, size = 0x12000, scoped, tag = 'internal scratch']
  %s0 = inlined_call_operand.vmem [shape: f32[2048,32], index: 0, kind: input, shape index: {}]
  %s1 = inlined_call_operand.vmem [shape: f32[16,32], index: 1, kind: input, shape index: {}]
  %s2 = inlined_call_operand.vmem [shape: f32[16,128], index: 2, kind: input, shape index: {}]
  %s3 = inlined_call_operand.vmem [shape: f32[1,16], index: 3, kind: input, shape index: {}]
  %s4 = inlined_call_operand.hbm [shape: f32[2048,128], index: 4, kind: output, shape index: {}]
  %s5 = sld [smem:[#allocation0]]
  $region49: #{conv1d_softmax_etm.3} parent=0
    _
  %s7 = ssub.s32 1, %s5
  %s8 = scalar_select 0, %s7, %s5
  $region1: #{conv1d_softmax_etm.3} parent=0
    #allocation2 [shape = 'u8[524288]{0}', space=vmem, size = 0x80000, scoped, tag = 'output window, operand 0']
    #allocation3 [shape = 's32[2]{0}', space=sflag, size = 0x8, scoped, tag = 'scoped memory for conv1d_softmax_etm.3']
    %9 = vsyncpa [#allocation3], 0
    %s10 = scalar_lea.sflag [#allocation3], 1
    %11 = vsyncpa %s10, 0
    loop: start=0, step=1, limit=6
    $region2: #{conv1d_softmax_etm.3} parent=1 // loop_pre_header
      _
    $region3: #{conv1d_softmax_etm.3} parent=1 // loop_header
      %s13 = sphi 0, %s17
      %p14 = scmp.ge.s32.totalorder %s13, 6
      %s23 = sphi 0, %s25
      %s26 = sphi 0, %s23
      %s27 = sphi 0, %s26
      %s43 = sphi 0, %s27
      %s47 = sphi 0, %s47
      %s49 = sphi 0, %s47
      %s50 = sphi 0, %s49
      %s64 = sphi 0, %s50
      %s68 = sphi 0, %s68
      %s70 = sphi 0, %s68
      %s71 = sphi 0, %s70
      %s85 = sphi 0, %s71
      %s89 = sphi 0, %s89
      %s91 = sphi 0, %s89
      %s92 = sphi 0, %s91
      %s106 = sphi 0, %s92
      %s112 = sphi 0, %s114
      %s115 = sphi 0, %s112
      %s116 = sphi 0, %s115
      %s132 = sphi 0, %s116
    $region4: #{conv1d_softmax_etm.3} parent=1 // loop_header_branch
      %16 = sbr.rel (%p14) target = $region8
    $region5: #{conv1d_softmax_etm.3} parent=1 // loop_body
      %s18 = ssub.s32 %s13, 1
      %s19 = ssub.s32 %s13, 2
      %s20 = sadd.s32 %s13, 1
      %s21 = ssub.s32 %s13, %s20
      %p22 = scmp.eq.s32.totalorder %s21, 0
      %s24 = sadd.s32 %s23, 1
      %s25 = scalar_select %p22, %s23, %s24
      %p28 = pneg %p22
      %p29 = scmp.eq.s32.totalorder %s13, 3
      %p30 = por %p28, %p29
      %p31 = scmp.ne.s32.totalorder %s23, %s26
      %p32 = scmp.eq.s32.totalorder %s13, 0
      %p33 = por %p31, %p32
      %p34 = scmp.ne.s32.totalorder %s23, %s26
      %p35 = scmp.eq.s32.totalorder %s18, 3
      %p36 = por %p34, %p35
      %p37 = scmp.ne.s32.totalorder %s26, %s27
      %p38 = scmp.eq.s32.totalorder %s18, 0
      %p39 = por %p37, %p38
      %p40 = scmp.ne.s32.totalorder %s26, %s27
      %p41 = scmp.eq.s32.totalorder %s19, 3
      %p42 = por %p40, %p41
      %p44 = scmp.ne.s32.totalorder %s27, %s43
      %p45 = scmp.eq.s32.totalorder %s19, 0
      %p46 = por %p44, %p45
      %s48 = sadd.s32 %s47, 1
      %p51 = scmp.eq.s32.totalorder %s13, 3
      %p52 = scmp.ne.s32.totalorder %s47, %s49
      %p53 = scmp.eq.s32.totalorder %s13, 0
      %p54 = por %p52, %p53
      %p55 = scmp.ne.s32.totalorder %s47, %s49
      %p56 = scmp.eq.s32.totalorder %s18, 3
      %p57 = por %p55, %p56
      %p58 = scmp.ne.s32.totalorder %s49, %s50
      %p59 = scmp.eq.s32.totalorder %s18, 0
      %p60 = por %p58, %p59
      %p61 = scmp.ne.s32.totalorder %s49, %s50
      %p62 = scmp.eq.s32.totalorder %s19, 3
      %p63 = por %p61, %p62
      %p65 = scmp.ne.s32.totalorder %s50, %s64
      %p66 = scmp.eq.s32.totalorder %s19, 0
      %p67 = por %p65, %p66
      %s69 = sadd.s32 %s68, 1
      %p72 = scmp.eq.s32.totalorder %s13, 3
      %p73 = scmp.ne.s32.totalorder %s68, %s70
      %p74 = scmp.eq.s32.totalorder %s13, 0
      %p75 = por %p73, %p74
      %p76 = scmp.ne.s32.totalorder %s68, %s70
      %p77 = scmp.eq.s32.totalorder %s18, 3
      %p78 = por %p76, %p77
      %p79 = scmp.ne.s32.totalorder %s70, %s71
      %p80 = scmp.eq.s32.totalorder %s18, 0
      %p81 = por %p79, %p80
      %p82 = scmp.ne.s32.totalorder %s70, %s71
      %p83 = scmp.eq.s32.totalorder %s19, 3
      %p84 = por %p82, %p83
      %p86 = scmp.ne.s32.totalorder %s71, %s85
      %p87 = scmp.eq.s32.totalorder %s19, 0
      %p88 = por %p86, %p87
      %s90 = sadd.s32 %s89, 1
      %p93 = scmp.eq.s32.totalorder %s13, 3
      %p94 = scmp.ne.s32.totalorder %s89, %s91
      %p95 = scmp.eq.s32.totalorder %s13, 0
      %p96 = por %p94, %p95
      %p97 = scmp.ne.s32.totalorder %s89, %s91
      %p98 = scmp.eq.s32.totalorder %s18, 3
      %p99 = por %p97, %p98
      %p100 = scmp.ne.s32.totalorder %s91, %s92
      %p101 = scmp.eq.s32.totalorder %s18, 0
      %p102 = por %p100, %p101
      %p103 = scmp.ne.s32.totalorder %s91, %s92
      %p104 = scmp.eq.s32.totalorder %s19, 3
      %p105 = por %p103, %p104
      %p107 = scmp.ne.s32.totalorder %s92, %s106
      %p108 = scmp.eq.s32.totalorder %s19, 0
      %p109 = por %p107, %p108
      %s110 = ssub.s32 %s13, %s20
      %p111 = scmp.eq.s32.totalorder %s110, 0
      %s113 = sadd.s32 %s112, 1
      %s114 = scalar_select %p111, %s112, %s113
      %p117 = pneg %p111
      %p118 = scmp.eq.s32.totalorder %s13, 3
      %p119 = por %p117, %p118
      %p120 = scmp.ne.s32.totalorder %s112, %s115
      %p121 = scmp.eq.s32.totalorder %s13, 0
      %p122 = por %p120, %p121
      %p123 = scmp.ne.s32.totalorder %s112, %s115
      %p124 = scmp.eq.s32.totalorder %s18, 3
      %p125 = por %p123, %p124
      %p126 = scmp.ne.s32.totalorder %s115, %s116
      %p127 = scmp.eq.s32.totalorder %s18, 0
      %p128 = por %p126, %p127
      %p129 = scmp.ne.s32.totalorder %s115, %s116
      %p130 = scmp.eq.s32.totalorder %s19, 3
      %p131 = por %p129, %p130
      %p133 = scmp.ne.s32.totalorder %s116, %s132
      %p134 = scmp.eq.s32.totalorder %s19, 0
      %p135 = por %p133, %p134
      %p136 = scmp.le.s32.totalorder 1, %s13
      %p137 = scmp.lt.s32.totalorder %s13, 5
      %p138 = pnand %p136, %p137
      %p139 = pneg %p138
      // Predicated region
      $region9: #{conv1d_softmax_etm.3} parent=5 // pred_check
        _
      $region10: #{conv1d_softmax_etm.3} parent=5 // pred_check_branch
        %141 = sbr.rel (%p138) target = $region12
      $region11: #{conv1d_softmax_etm.3} parent=5 // pred_region
        %s142 = ssub.s32 %s13, 1
        // Predicated region
        $region13: #{conv1d_softmax_etm.3} parent=11 // pred_check
          %p143 = pneg %p60
        $region14: #{conv1d_softmax_etm.3} parent=11 // pred_check_branch
          %145 = sbr.rel (%p143) target = $region16
        $region15: #{conv1d_softmax_etm.3} parent=11 // pred_region
          _
        $region16: #{conv1d_softmax_etm.3} parent=11 // pred_fallthru
          _
        // Predicated region
        $region17: #{conv1d_softmax_etm.3} parent=11 // pred_check
          %p146 = pneg %p81
        $region18: #{conv1d_softmax_etm.3} parent=11 // pred_check_branch
          %148 = sbr.rel (%p146) target = $region20
        $region19: #{conv1d_softmax_etm.3} parent=11 // pred_region
          _
        $region20: #{conv1d_softmax_etm.3} parent=11 // pred_fallthru
          _
        // Predicated region
        $region21: #{conv1d_softmax_etm.3} parent=11 // pred_check
          %p149 = pneg %p102
        $region22: #{conv1d_softmax_etm.3} parent=11 // pred_check_branch
          %151 = sbr.rel (%p149) target = $region24
        $region23: #{conv1d_softmax_etm.3} parent=11 // pred_region
          _
        $region24: #{conv1d_softmax_etm.3} parent=11 // pred_fallthru
          _
      $region12: #{conv1d_softmax_etm.3} parent=5 // pred_fallthru
        _
      %p152 = scmp.lt.s32.totalorder %s13, 4
      // Predicated region
      $region25: #{conv1d_softmax_etm.3} parent=5 // pred_check
        %p153 = pneg %p152
      $region26: #{conv1d_softmax_etm.3} parent=5 // pred_check_branch
        %155 = sbr.rel (%p153) target = $region28
      $region27: #{conv1d_softmax_etm.3} parent=5 // pred_region
        // Predicated region
        $region29: #{conv1d_softmax_etm.3} parent=27 // pred_check
          %p156 = pneg %p33
        $region30: #{conv1d_softmax_etm.3} parent=27 // pred_check_branch
          %158 = sbr.rel (%p156) target = $region32
        $region31: #{conv1d_softmax_etm.3} parent=27 // pred_region
          %s159 = smul.u32 64, %s13
          %p160 = scmp.lt.s32.totalorder %s159, 255
          %s161 = scalar_select %p160, %s159, 255
          %s162 = smul.addr %s161, 8
          %s163 = scalar_lea.vmem %s0, %s162
          %s164 = smul.u32 64, %s13
        $region32: #{conv1d_softmax_etm.3} parent=27 // pred_fallthru
          _
      $region28: #{conv1d_softmax_etm.3} parent=5 // pred_fallthru
        _
      %p165 = scmp.le.s32.totalorder 1, %s13
      %p166 = scmp.lt.s32.totalorder %s13, 5
      %p167 = pnand %p165, %p166
      %p168 = pneg %p167
      // Predicated region
      $region33: #{conv1d_softmax_etm.3} parent=5 // pred_check
        _
      $region34: #{conv1d_softmax_etm.3} parent=5 // pred_check_branch
        %170 = sbr.rel (%p167) target = $region36
      $region35: #{conv1d_softmax_etm.3} parent=5 // pred_region
        %s171 = ssub.s32 %s13, 1
        %s172 = smul.u32 64, %s18
        %p173 = scmp.lt.s32.totalorder %s172, 255
        %s174 = scalar_select %p173, %s172, 255
        %s175 = smul.addr %s174, 8
        %s176 = scalar_lea.vmem %s0, %s175
        %p177 = pneg %p39
        %p178 = pneg %p36
        %p179 = pneg %p60
        %p180 = pneg %p57
        %p181 = pneg %p81
        %p182 = pneg %p78
        %p183 = pneg %p102
        %p184 = pneg %p99
        %p185 = pneg %p128
        %p186 = pneg %p125
        %s187 = sand.u32 %s115, 1
        %s188 = scalar_lea.sflag [#allocation3], %s187
        %s189 = sand.u32 %s115, 1
        %s190 = smul.addr %s189, 512
        %s191 = scalar_lea.vmem [#allocation2], %s190
        %s192 = smul.u32 64, %s18
        %p193 = scmp.lt.s32.totalorder %s192, 255
        %s194 = scalar_select %p193, %s192, 255
        %s195 = smul.addr %s194, 8
        %s196 = scalar_lea.vmem %s0, %s195
        %s197 = smul.u32 64, %s18
        %s198 = smul.u32 64, %s18
        %v200 = vld [vmem:[%s196] sm:$0xff]
        %v201 = vld [vmem:[%s196 + $0x8] sm:$0xff]
        %v202 = vld [vmem:[%s196 + $0x10] sm:$0xff]
        %v203 = vld [vmem:[%s196 + $0x18] sm:$0xff]
        %v204 = vld [vmem:[%s196 + $0x20] sm:$0xff]
        %v205 = vld [vmem:[%s196 + $0x28] sm:$0xff]
        %v206 = vld [vmem:[%s196 + $0x30] sm:$0xff]
        %v207 = vld [vmem:[%s196 + $0x38] sm:$0xff]
        %v208 = vld [vmem:[%s196 + $0x40] sm:$0xff]
        %v209 = vld [vmem:[%s196 + $0x48] sm:$0xff]
        %v210 = vld [vmem:[%s196 + $0x50] sm:$0xff]
        %v211 = vld [vmem:[%s196 + $0x58] sm:$0xff]
        %v212 = vld [vmem:[%s196 + $0x60] sm:$0xff]
        %v213 = vld [vmem:[%s196 + $0x68] sm:$0xff]
        %v214 = vld [vmem:[%s196 + $0x70] sm:$0xff]
        %v215 = vld [vmem:[%s196 + $0x78] sm:$0xff]
        %v216 = vld [vmem:[%s196 + $0x80] sm:$0xff]
        %v217 = vld [vmem:[%s196 + $0x88] sm:$0xff]
        %v218 = vld [vmem:[%s196 + $0x90] sm:$0xff]
        %v219 = vld [vmem:[%s196 + $0x98] sm:$0xff]
        %v220 = vld [vmem:[%s196 + $0xa0] sm:$0xff]
        %v221 = vld [vmem:[%s196 + $0xa8] sm:$0xff]
        %v222 = vld [vmem:[%s196 + $0xb0] sm:$0xff]
        %v223 = vld [vmem:[%s196 + $0xb8] sm:$0xff]
        %v224 = vld [vmem:[%s196 + $0xc0] sm:$0xff]
        %v225 = vld [vmem:[%s196 + $0xc8] sm:$0xff]
        %v226 = vld [vmem:[%s196 + $0xd0] sm:$0xff]
        %v227 = vld [vmem:[%s196 + $0xd8] sm:$0xff]
        %v228 = vld [vmem:[%s196 + $0xe0] sm:$0xff]
        %v229 = vld [vmem:[%s196 + $0xe8] sm:$0xff]
        %v230 = vld [vmem:[%s196 + $0xf0] sm:$0xff]
        %v231 = vld [vmem:[%s196 + $0xf8] sm:$0xff]
        %v232 = vld [vmem:[%s196 + $0x100] sm:$0xff]
        %v233 = vld [vmem:[%s196 + $0x108] sm:$0xff]
        %v234 = vld [vmem:[%s196 + $0x110] sm:$0xff]
        %v235 = vld [vmem:[%s196 + $0x118] sm:$0xff]
        %v236 = vld [vmem:[%s196 + $0x120] sm:$0xff]
        %v237 = vld [vmem:[%s196 + $0x128] sm:$0xff]
        %v238 = vld [vmem:[%s196 + $0x130] sm:$0xff]
        %v239 = vld [vmem:[%s196 + $0x138] sm:$0xff]
        %v240 = vld [vmem:[%s196 + $0x140] sm:$0xff]
        %v241 = vld [vmem:[%s196 + $0x148] sm:$0xff]
        %v242 = vld [vmem:[%s196 + $0x150] sm:$0xff]
        %v243 = vld [vmem:[%s196 + $0x158] sm:$0xff]
        %v244 = vld [vmem:[%s196 + $0x160] sm:$0xff]
        %v245 = vld [vmem:[%s196 + $0x168] sm:$0xff]
        %v246 = vld [vmem:[%s196 + $0x170] sm:$0xff]
        %v247 = vld [vmem:[%s196 + $0x178] sm:$0xff]
        %v248 = vld [vmem:[%s196 + $0x180] sm:$0xff]
        %v249 = vld [vmem:[%s196 + $0x188] sm:$0xff]
        %v250 = vld [vmem:[%s196 + $0x190] sm:$0xff]
        %v251 = vld [vmem:[%s196 + $0x198] sm:$0xff]
        %v252 = vld [vmem:[%s196 + $0x1a0] sm:$0xff]
        %v253 = vld [vmem:[%s196 + $0x1a8] sm:$0xff]
        %v254 = vld [vmem:[%s196 + $0x1b0] sm:$0xff]
        %v255 = vld [vmem:[%s196 + $0x1b8] sm:$0xff]
        %v256 = vld [vmem:[%s196 + $0x1c0] sm:$0xff]
        %v257 = vld [vmem:[%s196 + $0x1c8] sm:$0xff]
        %v258 = vld [vmem:[%s196 + $0x1d0] sm:$0xff]
        %v259 = vld [vmem:[%s196 + $0x1d8] sm:$0xff]
        %v260 = vld [vmem:[%s196 + $0x1e0] sm:$0xff]
        %v261 = vld [vmem:[%s196 + $0x1e8] sm:$0xff]
        %v262 = vld [vmem:[%s196 + $0x1f0] sm:$0xff]
        %v263 = vld [vmem:[%s196 + $0x1f8] sm:$0xff]
        %v264 = vpack.c.bf16 %v201, %v200
        %v265 = vpack.c.bf16 %v203, %v202
        %v266 = vpack.c.bf16 %v205, %v204
        %v267 = vpack.c.bf16 %v207, %v206
        %v268 = vpack.c.bf16 %v209, %v208
        %v269 = vpack.c.bf16 %v211, %v210
        %v270 = vpack.c.bf16 %v213, %v212
        %v271 = vpack.c.bf16 %v215, %v214
        %v272 = vpack.c.bf16 %v217, %v216
        %v273 = vpack.c.bf16 %v219, %v218
        %v274 = vpack.c.bf16 %v221, %v220
        %v275 = vpack.c.bf16 %v223, %v222
        %v276 = vpack.c.bf16 %v225, %v224
        %v277 = vpack.c.bf16 %v227, %v226
        %v278 = vpack.c.bf16 %v229, %v228
        %v279 = vpack.c.bf16 %v231, %v230
        %v280 = vpack.c.bf16 %v233, %v232
        %v281 = vpack.c.bf16 %v235, %v234
        %v282 = vpack.c.bf16 %v237, %v236
        %v283 = vpack.c.bf16 %v239, %v238
        %v284 = vpack.c.bf16 %v241, %v240
        %v285 = vpack.c.bf16 %v243, %v242
        %v286 = vpack.c.bf16 %v245, %v244
        %v287 = vpack.c.bf16 %v247, %v246
        %v288 = vpack.c.bf16 %v249, %v248
        %v289 = vpack.c.bf16 %v251, %v250
        %v290 = vpack.c.bf16 %v253, %v252
        %v291 = vpack.c.bf16 %v255, %v254
        %v292 = vpack.c.bf16 %v257, %v256
        %v293 = vpack.c.bf16 %v259, %v258
        %v294 = vpack.c.bf16 %v261, %v260
        %v295 = vpack.c.bf16 %v263, %v262
        %v296 = vld [vmem:[%s1] sm:$0xff]
        %v297 = vld [vmem:[%s1 + $0x8] sm:$0xff]
        %v298 = vpack.c.bf16 %v297, %v296
        %vm299 = vcmask 261120
        %v301 = vsel %vm299, %v264, 0
        %v304 = vsel %vm299, %v265, 0
        %v307 = vsel %vm299, %v266, 0
        %v310 = vsel %vm299, %v267, 0
        %v313 = vsel %vm299, %v268, 0
        %v316 = vsel %vm299, %v269, 0
        %v319 = vsel %vm299, %v270, 0
        %v322 = vsel %vm299, %v271, 0
        %v325 = vsel %vm299, %v272, 0
        %v328 = vsel %vm299, %v273, 0
        %v331 = vsel %vm299, %v274, 0
        %v334 = vsel %vm299, %v275, 0
        %v337 = vsel %vm299, %v276, 0
        %v340 = vsel %vm299, %v277, 0
        %v343 = vsel %vm299, %v278, 0
        %v346 = vsel %vm299, %v279, 0
        %v349 = vsel %vm299, %v280, 0
        %v352 = vsel %vm299, %v281, 0
        %v355 = vsel %vm299, %v282, 0
        %v358 = vsel %vm299, %v283, 0
        %v361 = vsel %vm299, %v284, 0
        %v364 = vsel %vm299, %v285, 0
        %v367 = vsel %vm299, %v286, 0
        %v370 = vsel %vm299, %v287, 0
        %v373 = vsel %vm299, %v288, 0
        %v376 = vsel %vm299, %v289, 0
        %v379 = vsel %vm299, %v290, 0
        %v382 = vsel %vm299, %v291, 0
        %v385 = vsel %vm299, %v292, 0
        %v388 = vsel %vm299, %v293, 0
        %v391 = vsel %vm299, %v294, 0
        %v394 = vsel %vm299, %v295, 0
        %v397 = vsel %vm299, %v298, 0
        %399 = vmatprep.subr.bf16.mxu0 0
        %400 = vmatpush1.bf16.xpose.msra.mxu0 0
        %401 = vmatprep.subr.bf16.mxu0 0
        %402 = vmatpush1.bf16.xpose.msra.mxu0 0
        %403 = vmatprep.subr.bf16.mxu0 0
        %404 = vmatpush1.bf16.xpose.msra.mxu0 0
        %405 = vmatprep.subr.bf16.mxu0 0
        %406 = vmatpush1.bf16.xpose.msra.mxu0 0
        %407 = vmatprep.subr.bf16.mxu0 0
        %408 = vmatpush1.bf16.xpose.msra.mxu0 0
        %409 = vmatprep.subr.bf16.mxu0 0
        %410 = vmatpush1.bf16.xpose.msra.mxu0 0
        %411 = vmatprep.subr.bf16.mxu0 0
        %412 = vmatpush1.bf16.xpose.msra.mxu0 0
        %413 = vmatprep.subr.bf16.mxu0 0
        %414 = vmatpush1.bf16.xpose.msra.mxu0 %v397
        %415 = vmatprep.subr.bf16.mxu0 0
        %416 = vmatpush2.bf16.xpose.msra.mxu0 0
        %417 = vmatprep.subr.bf16.mxu0 0
        %418 = vmatpush2.bf16.xpose.msra.mxu0 0
        %419 = vmatprep.subr.bf16.mxu0 0
        %420 = vmatpush2.bf16.xpose.msra.mxu0 0
        %421 = vmatprep.subr.bf16.mxu0 0
        %422 = vmatpush2.bf16.xpose.msra.mxu0 0
        %423 = vmatprep.subr.bf16.mxu0 0
        %424 = vmatpush2.bf16.xpose.msra.mxu0 0
        %425 = vmatprep.subr.bf16.mxu0 0
        %426 = vmatpush2.bf16.xpose.msra.mxu0 0
        %427 = vmatprep.subr.bf16.mxu0 0
        %428 = vmatpush2.bf16.xpose.msra.mxu0 0
        %429 = vmatprep.subr.bf16.mxu0 0
        %430 = vmatpush2.bf16.xpose.msra.mxu0 0
        %431 = vmatprep.mubr.bf16.mxu0 0
        %432 = vmatmul.mubr.bf16.gmra.mxu0 %v301
        %v433 = vpop.f32.mrf.mxu0
        %v434 = vadd.f32 0.0, %v433
        %v435 = vpop.f32.mrf.mxu0
        %v436 = vpop.f32.mrf.mxu0
        %v437 = vadd.f32 0.0, %v436
        %v438 = vpop.f32.mrf.mxu0
        %439 = vmatprep.mubr.bf16.mxu0 0
        %440 = vmatmul.mubr.bf16.gmra.mxu0 %v304
        %v441 = vpop.f32.mrf.mxu0
        %v442 = vadd.f32 0.0, %v441
        %v443 = vpop.f32.mrf.mxu0
        %v444 = vpop.f32.mrf.mxu0
        %v445 = vadd.f32 0.0, %v444
        %v446 = vpop.f32.mrf.mxu0
        %447 = vmatprep.mubr.bf16.mxu0 0
        %448 = vmatmul.mubr.bf16.gmra.mxu0 %v307
        %v449 = vpop.f32.mrf.mxu0
        %v450 = vadd.f32 0.0, %v449
        %v451 = vpop.f32.mrf.mxu0
        %v452 = vpop.f32.mrf.mxu0
        %v453 = vadd.f32 0.0, %v452
        %v454 = vpop.f32.mrf.mxu0
        %455 = vmatprep.mubr.bf16.mxu0 0
        %456 = vmatmul.mubr.bf16.gmra.mxu0 %v310
        %v457 = vpop.f32.mrf.mxu0
        %v458 = vadd.f32 0.0, %v457
        %v459 = vpop.f32.mrf.mxu0
        %v460 = vpop.f32.mrf.mxu0
        %v461 = vadd.f32 0.0, %v460
        %v462 = vpop.f32.mrf.mxu0
        %463 = vmatprep.mubr.bf16.mxu0 0
        %464 = vmatmul.mubr.bf16.gmra.mxu0 %v313
        %v465 = vpop.f32.mrf.mxu0
        %v466 = vadd.f32 0.0, %v465
        %v467 = vpop.f32.mrf.mxu0
        %v468 = vpop.f32.mrf.mxu0
        %v469 = vadd.f32 0.0, %v468
        %v470 = vpop.f32.mrf.mxu0
        %471 = vmatprep.mubr.bf16.mxu0 0
        %472 = vmatmul.mubr.bf16.gmra.mxu0 %v316
        %v473 = vpop.f32.mrf.mxu0
        %v474 = vadd.f32 0.0, %v473
        %v475 = vpop.f32.mrf.mxu0
        %v476 = vpop.f32.mrf.mxu0
        %v477 = vadd.f32 0.0, %v476
        %v478 = vpop.f32.mrf.mxu0
        %479 = vmatprep.mubr.bf16.mxu0 0
        %480 = vmatmul.mubr.bf16.gmra.mxu0 %v319
        %v481 = vpop.f32.mrf.mxu0
        %v482 = vadd.f32 0.0, %v481
        %v483 = vpop.f32.mrf.mxu0
        %v484 = vpop.f32.mrf.mxu0
        %v485 = vadd.f32 0.0, %v484
        %v486 = vpop.f32.mrf.mxu0
        %487 = vmatprep.mubr.bf16.mxu0 0
        %488 = vmatmul.mubr.bf16.gmra.mxu0 %v322
        %v489 = vpop.f32.mrf.mxu0
        %v490 = vadd.f32 0.0, %v489
        %v491 = vpop.f32.mrf.mxu0
        %v492 = vpop.f32.mrf.mxu0
        %v493 = vadd.f32 0.0, %v492
        %v494 = vpop.f32.mrf.mxu0
        %495 = vmatprep.mubr.bf16.mxu0 0
        %496 = vmatmul.mubr.bf16.gmra.mxu0 %v325
        %v497 = vpop.f32.mrf.mxu0
        %v498 = vadd.f32 0.0, %v497
        %v499 = vpop.f32.mrf.mxu0
        %v500 = vpop.f32.mrf.mxu0
        %v501 = vadd.f32 0.0, %v500
        %v502 = vpop.f32.mrf.mxu0
        %503 = vmatprep.mubr.bf16.mxu0 0
        %504 = vmatmul.mubr.bf16.gmra.mxu0 %v328
        %v505 = vpop.f32.mrf.mxu0
        %v506 = vadd.f32 0.0, %v505
        %v507 = vpop.f32.mrf.mxu0
        %v508 = vpop.f32.mrf.mxu0
        %v509 = vadd.f32 0.0, %v508
        %v510 = vpop.f32.mrf.mxu0
        %511 = vmatprep.mubr.bf16.mxu0 0
        %512 = vmatmul.mubr.bf16.gmra.mxu0 %v331
        %v513 = vpop.f32.mrf.mxu0
        %v514 = vadd.f32 0.0, %v513
        %v515 = vpop.f32.mrf.mxu0
        %v516 = vpop.f32.mrf.mxu0
        %v517 = vadd.f32 0.0, %v516
        %v518 = vpop.f32.mrf.mxu0
        %519 = vmatprep.mubr.bf16.mxu0 0
        %520 = vmatmul.mubr.bf16.gmra.mxu0 %v334
        %v521 = vpop.f32.mrf.mxu0
        %v522 = vadd.f32 0.0, %v521
        %v523 = vpop.f32.mrf.mxu0
        %v524 = vpop.f32.mrf.mxu0
        %v525 = vadd.f32 0.0, %v524
        %v526 = vpop.f32.mrf.mxu0
        %527 = vmatprep.mubr.bf16.mxu0 0
        %528 = vmatmul.mubr.bf16.gmra.mxu0 %v337
        %v529 = vpop.f32.mrf.mxu0
        %v530 = vadd.f32 0.0, %v529
        %v531 = vpop.f32.mrf.mxu0
        %v532 = vpop.f32.mrf.mxu0
        %v533 = vadd.f32 0.0, %v532
        %v534 = vpop.f32.mrf.mxu0
        %535 = vmatprep.mubr.bf16.mxu0 0
        %536 = vmatmul.mubr.bf16.gmra.mxu0 %v340
        %v537 = vpop.f32.mrf.mxu0
        %v538 = vadd.f32 0.0, %v537
        %v539 = vpop.f32.mrf.mxu0
        %v540 = vpop.f32.mrf.mxu0
        %v541 = vadd.f32 0.0, %v540
        %v542 = vpop.f32.mrf.mxu0
        %543 = vmatprep.mubr.bf16.mxu0 0
        %544 = vmatmul.mubr.bf16.gmra.mxu0 %v343
        %v545 = vpop.f32.mrf.mxu0
        %v546 = vadd.f32 0.0, %v545
        %v547 = vpop.f32.mrf.mxu0
        %v548 = vpop.f32.mrf.mxu0
        %v549 = vadd.f32 0.0, %v548
        %v550 = vpop.f32.mrf.mxu0
        %551 = vmatprep.mubr.bf16.mxu0 0
        %552 = vmatmul.mubr.bf16.gmra.mxu0 %v346
        %v553 = vpop.f32.mrf.mxu0
        %v554 = vadd.f32 0.0, %v553
        %v555 = vpop.f32.mrf.mxu0
        %v556 = vpop.f32.mrf.mxu0
        %v557 = vadd.f32 0.0, %v556
        %v558 = vpop.f32.mrf.mxu0
        %559 = vmatprep.mubr.bf16.mxu0 0
        %560 = vmatmul.mubr.bf16.gmra.mxu0 %v349
        %v561 = vpop.f32.mrf.mxu0
        %v562 = vadd.f32 0.0, %v561
        %v563 = vpop.f32.mrf.mxu0
        %v564 = vpop.f32.mrf.mxu0
        %v565 = vadd.f32 0.0, %v564
        %v566 = vpop.f32.mrf.mxu0
        %567 = vmatprep.mubr.bf16.mxu0 0
        %568 = vmatmul.mubr.bf16.gmra.mxu0 %v352
        %v569 = vpop.f32.mrf.mxu0
        %v570 = vadd.f32 0.0, %v569
        %v571 = vpop.f32.mrf.mxu0
        %v572 = vpop.f32.mrf.mxu0
        %v573 = vadd.f32 0.0, %v572
        %v574 = vpop.f32.mrf.mxu0
        %575 = vmatprep.mubr.bf16.mxu0 0
        %576 = vmatmul.mubr.bf16.gmra.mxu0 %v355
        %v577 = vpop.f32.mrf.mxu0
        %v578 = vadd.f32 0.0, %v577
        %v579 = vpop.f32.mrf.mxu0
        %v580 = vpop.f32.mrf.mxu0
        %v581 = vadd.f32 0.0, %v580
        %v582 = vpop.f32.mrf.mxu0
        %583 = vmatprep.mubr.bf16.mxu0 0
        %584 = vmatmul.mubr.bf16.gmra.mxu0 %v358
        %v585 = vpop.f32.mrf.mxu0
        %v586 = vadd.f32 0.0, %v585
        %v587 = vpop.f32.mrf.mxu0
        %v588 = vpop.f32.mrf.mxu0
        %v589 = vadd.f32 0.0, %v588
        %v590 = vpop.f32.mrf.mxu0
        %591 = vmatprep.mubr.bf16.mxu0 0
        %592 = vmatmul.mubr.bf16.gmra.mxu0 %v361
        %v593 = vpop.f32.mrf.mxu0
        %v594 = vadd.f32 0.0, %v593
        %v595 = vpop.f32.mrf.mxu0
        %v596 = vpop.f32.mrf.mxu0
        %v597 = vadd.f32 0.0, %v596
        %v598 = vpop.f32.mrf.mxu0
        %599 = vmatprep.mubr.bf16.mxu0 0
        %600 = vmatmul.mubr.bf16.gmra.mxu0 %v364
        %v601 = vpop.f32.mrf.mxu0
        %v602 = vadd.f32 0.0, %v601
        %v603 = vpop.f32.mrf.mxu0
        %v604 = vpop.f32.mrf.mxu0
        %v605 = vadd.f32 0.0, %v604
        %v606 = vpop.f32.mrf.mxu0
        %607 = vmatprep.mubr.bf16.mxu0 0
        %608 = vmatmul.mubr.bf16.gmra.mxu0 %v367
        %v609 = vpop.f32.mrf.mxu0
        %v610 = vadd.f32 0.0, %v609
        %v611 = vpop.f32.mrf.mxu0
        %v612 = vpop.f32.mrf.mxu0
        %v613 = vadd.f32 0.0, %v612
        %v614 = vpop.f32.mrf.mxu0
        %615 = vmatprep.mubr.bf16.mxu0 0
        %616 = vmatmul.mubr.bf16.gmra.mxu0 %v370
        %v617 = vpop.f32.mrf.mxu0
        %v618 = vadd.f32 0.0, %v617
        %v619 = vpop.f32.mrf.mxu0
        %v620 = vpop.f32.mrf.mxu0
        %v621 = vadd.f32 0.0, %v620
        %v622 = vpop.f32.mrf.mxu0
        %623 = vmatprep.mubr.bf16.mxu0 0
        %624 = vmatmul.mubr.bf16.gmra.mxu0 %v373
        %v625 = vpop.f32.mrf.mxu0
        %v626 = vadd.f32 0.0, %v625
        %v627 = vpop.f32.mrf.mxu0
        %v628 = vpop.f32.mrf.mxu0
        %v629 = vadd.f32 0.0, %v628
        %v630 = vpop.f32.mrf.mxu0
        %631 = vmatprep.mubr.bf16.mxu0 0
        %632 = vmatmul.mubr.bf16.gmra.mxu0 %v376
        %v633 = vpop.f32.mrf.mxu0
        %v634 = vadd.f32 0.0, %v633
        %v635 = vpop.f32.mrf.mxu0
        %v636 = vpop.f32.mrf.mxu0
        %v637 = vadd.f32 0.0, %v636
        %v638 = vpop.f32.mrf.mxu0
        %639 = vmatprep.mubr.bf16.mxu0 0
        %640 = vmatmul.mubr.bf16.gmra.mxu0 %v379
        %v641 = vpop.f32.mrf.mxu0
        %v642 = vadd.f32 0.0, %v641
        %v643 = vpop.f32.mrf.mxu0
        %v644 = vpop.f32.mrf.mxu0
        %v645 = vadd.f32 0.0, %v644
        %v646 = vpop.f32.mrf.mxu0
        %647 = vmatprep.mubr.bf16.mxu0 0
        %648 = vmatmul.mubr.bf16.gmra.mxu0 %v382
        %v649 = vpop.f32.mrf.mxu0
        %v650 = vadd.f32 0.0, %v649
        %v651 = vpop.f32.mrf.mxu0
        %v652 = vpop.f32.mrf.mxu0
        %v653 = vadd.f32 0.0, %v652
        %v654 = vpop.f32.mrf.mxu0
        %655 = vmatprep.mubr.bf16.mxu0 0
        %656 = vmatmul.mubr.bf16.gmra.mxu0 %v385
        %v657 = vpop.f32.mrf.mxu0
        %v658 = vadd.f32 0.0, %v657
        %v659 = vpop.f32.mrf.mxu0
        %v660 = vpop.f32.mrf.mxu0
        %v661 = vadd.f32 0.0, %v660
        %v662 = vpop.f32.mrf.mxu0
        %663 = vmatprep.mubr.bf16.mxu0 0
        %664 = vmatmul.mubr.bf16.gmra.mxu0 %v388
        %v665 = vpop.f32.mrf.mxu0
        %v666 = vadd.f32 0.0, %v665
        %v667 = vpop.f32.mrf.mxu0
        %v668 = vpop.f32.mrf.mxu0
        %v669 = vadd.f32 0.0, %v668
        %v670 = vpop.f32.mrf.mxu0
        %671 = vmatprep.mubr.bf16.mxu0 0
        %672 = vmatmul.mubr.bf16.gmra.mxu0 %v391
        %v673 = vpop.f32.mrf.mxu0
        %v674 = vadd.f32 0.0, %v673
        %v675 = vpop.f32.mrf.mxu0
        %v676 = vpop.f32.mrf.mxu0
        %v677 = vadd.f32 0.0, %v676
        %v678 = vpop.f32.mrf.mxu0
        %679 = vmatprep.mubr.bf16.mxu0 0
        %680 = vmatmul.mubr.bf16.gmra.mxu0 %v394
        %v681 = vpop.f32.mrf.mxu0
        %v682 = vadd.f32 0.0, %v681
        %v683 = vpop.f32.mrf.mxu0
        %v684 = vpop.f32.mrf.mxu0
        %v685 = vadd.f32 0.0, %v684
        %v686 = vpop.f32.mrf.mxu0
        %687 = vdwg.mxu0
        %v688 = vld [vmem:[%s3] sm:$0x1]
        %v690 = vlaneseq
        %v691 = vshrl.u32 %v690, 7
        %v692 = vsub.s32 0, %v691
        %v693 = vrot.slane %v688, %v692
        %v695 = vsub.f32 %v434, %v693
        %v696 = vsub.f32 %v437, %v693
        %v697 = vsub.f32 %v442, %v693
        %v698 = vsub.f32 %v445, %v693
        %v699 = vsub.f32 %v450, %v693
        %v700 = vsub.f32 %v453, %v693
        %v701 = vsub.f32 %v458, %v693
        %v702 = vsub.f32 %v461, %v693
        %v703 = vsub.f32 %v466, %v693
        %v704 = vsub.f32 %v469, %v693
        %v705 = vsub.f32 %v474, %v693
        %v706 = vsub.f32 %v477, %v693
        %v707 = vsub.f32 %v482, %v693
        %v708 = vsub.f32 %v485, %v693
        %v709 = vsub.f32 %v490, %v693
        %v710 = vsub.f32 %v493, %v693
        %v711 = vsub.f32 %v498, %v693
        %v712 = vsub.f32 %v501, %v693
        %v713 = vsub.f32 %v506, %v693
        %v714 = vsub.f32 %v509, %v693
        %v715 = vsub.f32 %v514, %v693
        %v716 = vsub.f32 %v517, %v693
        %v717 = vsub.f32 %v522, %v693
        %v718 = vsub.f32 %v525, %v693
        %v719 = vsub.f32 %v530, %v693
        %v720 = vsub.f32 %v533, %v693
        %v721 = vsub.f32 %v538, %v693
        %v722 = vsub.f32 %v541, %v693
        %v723 = vsub.f32 %v546, %v693
        %v724 = vsub.f32 %v549, %v693
        %v725 = vsub.f32 %v554, %v693
        %v726 = vsub.f32 %v557, %v693
        %v727 = vsub.f32 %v562, %v693
        %v728 = vsub.f32 %v565, %v693
        %v729 = vsub.f32 %v570, %v693
        %v730 = vsub.f32 %v573, %v693
        %v731 = vsub.f32 %v578, %v693
        %v732 = vsub.f32 %v581, %v693
        %v733 = vsub.f32 %v586, %v693
        %v734 = vsub.f32 %v589, %v693
        %v735 = vsub.f32 %v594, %v693
        %v736 = vsub.f32 %v597, %v693
        %v737 = vsub.f32 %v602, %v693
        %v738 = vsub.f32 %v605, %v693
        %v739 = vsub.f32 %v610, %v693
        %v740 = vsub.f32 %v613, %v693
        %v741 = vsub.f32 %v618, %v693
        %v742 = vsub.f32 %v621, %v693
        %v743 = vsub.f32 %v626, %v693
        %v744 = vsub.f32 %v629, %v693
        %v745 = vsub.f32 %v634, %v693
        %v746 = vsub.f32 %v637, %v693
        %v747 = vsub.f32 %v642, %v693
        %v748 = vsub.f32 %v645, %v693
        %v749 = vsub.f32 %v650, %v693
        %v750 = vsub.f32 %v653, %v693
        %v751 = vsub.f32 %v658, %v693
        %v752 = vsub.f32 %v661, %v693
        %v753 = vsub.f32 %v666, %v693
        %v754 = vsub.f32 %v669, %v693
        %v755 = vsub.f32 %v674, %v693
        %v756 = vsub.f32 %v677, %v693
        %v757 = vsub.f32 %v682, %v693
        %v758 = vsub.f32 %v685, %v693
        %v759 = vmul.f32 %v695, 1.442695
        %v760 = vpow.pop %v759
        %v761 = vmul.f32 %v696, 1.442695
        %v762 = vpow.pop %v761
        %v763 = vmul.f32 %v697, 1.442695
        %v764 = vpow.pop %v763
        %v765 = vmul.f32 %v698, 1.442695
        %v766 = vpow.pop %v765
        %v767 = vmul.f32 %v699, 1.442695
        %v768 = vpow.pop %v767
        %v769 = vmul.f32 %v700, 1.442695
        %v770 = vpow.pop %v769
        %v771 = vmul.f32 %v701, 1.442695
        %v772 = vpow.pop %v771
        %v773 = vmul.f32 %v702, 1.442695
        %v774 = vpow.pop %v773
        %v775 = vmul.f32 %v703, 1.442695
        %v776 = vpow.pop %v775
        %v777 = vmul.f32 %v704, 1.442695
        %v778 = vpow.pop %v777
        %v779 = vmul.f32 %v705, 1.442695
        %v780 = vpow.pop %v779
        %v781 = vmul.f32 %v706, 1.442695
        %v782 = vpow.pop %v781
        %v783 = vmul.f32 %v707, 1.442695
        %v784 = vpow.pop %v783
        %v785 = vmul.f32 %v708, 1.442695
        %v786 = vpow.pop %v785
        %v787 = vmul.f32 %v709, 1.442695
        %v788 = vpow.pop %v787
        %v789 = vmul.f32 %v710, 1.442695
        %v790 = vpow.pop %v789
        %v791 = vmul.f32 %v711, 1.442695
        %v792 = vpow.pop %v791
        %v793 = vmul.f32 %v712, 1.442695
        %v794 = vpow.pop %v793
        %v795 = vmul.f32 %v713, 1.442695
        %v796 = vpow.pop %v795
        %v797 = vmul.f32 %v714, 1.442695
        %v798 = vpow.pop %v797
        %v799 = vmul.f32 %v715, 1.442695
        %v800 = vpow.pop %v799
        %v801 = vmul.f32 %v716, 1.442695
        %v802 = vpow.pop %v801
        %v803 = vmul.f32 %v717, 1.442695
        %v804 = vpow.pop %v803
        %v805 = vmul.f32 %v718, 1.442695
        %v806 = vpow.pop %v805
        %v807 = vmul.f32 %v719, 1.442695
        %v808 = vpow.pop %v807
        %v809 = vmul.f32 %v720, 1.442695
        %v810 = vpow.pop %v809
        %v811 = vmul.f32 %v721, 1.442695
        %v812 = vpow.pop %v811
        %v813 = vmul.f32 %v722, 1.442695
        %v814 = vpow.pop %v813
        %v815 = vmul.f32 %v723, 1.442695
        %v816 = vpow.pop %v815
        %v817 = vmul.f32 %v724, 1.442695
        %v818 = vpow.pop %v817
        %v819 = vmul.f32 %v725, 1.442695
        %v820 = vpow.pop %v819
        %v821 = vmul.f32 %v726, 1.442695
        %v822 = vpow.pop %v821
        %v823 = vmul.f32 %v727, 1.442695
        %v824 = vpow.pop %v823
        %v825 = vmul.f32 %v728, 1.442695
        %v826 = vpow.pop %v825
        %v827 = vmul.f32 %v729, 1.442695
        %v828 = vpow.pop %v827
        %v829 = vmul.f32 %v730, 1.442695
        %v830 = vpow.pop %v829
        %v831 = vmul.f32 %v731, 1.442695
        %v832 = vpow.pop %v831
        %v833 = vmul.f32 %v732, 1.442695
        %v834 = vpow.pop %v833
        %v835 = vmul.f32 %v733, 1.442695
        %v836 = vpow.pop %v835
        %v837 = vmul.f32 %v734, 1.442695
        %v838 = vpow.pop %v837
        %v839 = vmul.f32 %v735, 1.442695
        %v840 = vpow.pop %v839
        %v841 = vmul.f32 %v736, 1.442695
        %v842 = vpow.pop %v841
        %v843 = vmul.f32 %v737, 1.442695
        %v844 = vpow.pop %v843
        %v845 = vmul.f32 %v738, 1.442695
        %v846 = vpow.pop %v845
        %v847 = vmul.f32 %v739, 1.442695
        %v848 = vpow.pop %v847
        %v849 = vmul.f32 %v740, 1.442695
        %v850 = vpow.pop %v849
        %v851 = vmul.f32 %v741, 1.442695
        %v852 = vpow.pop %v851
        %v853 = vmul.f32 %v742, 1.442695
        %v854 = vpow.pop %v853
        %v855 = vmul.f32 %v743, 1.442695
        %v856 = vpow.pop %v855
        %v857 = vmul.f32 %v744, 1.442695
        %v858 = vpow.pop %v857
        %v859 = vmul.f32 %v745, 1.442695
        %v860 = vpow.pop %v859
        %v861 = vmul.f32 %v746, 1.442695
        %v862 = vpow.pop %v861
        %v863 = vmul.f32 %v747, 1.442695
        %v864 = vpow.pop %v863
        %v865 = vmul.f32 %v748, 1.442695
        %v866 = vpow.pop %v865
        %v867 = vmul.f32 %v749, 1.442695
        %v868 = vpow.pop %v867
        %v869 = vmul.f32 %v750, 1.442695
        %v870 = vpow.pop %v869
        %v871 = vmul.f32 %v751, 1.442695
        %v872 = vpow.pop %v871
        %v873 = vmul.f32 %v752, 1.442695
        %v874 = vpow.pop %v873
        %v875 = vmul.f32 %v753, 1.442695
        %v876 = vpow.pop %v875
        %v877 = vmul.f32 %v754, 1.442695
        %v878 = vpow.pop %v877
        %v879 = vmul.f32 %v755, 1.442695
        %v880 = vpow.pop %v879
        %v881 = vmul.f32 %v756, 1.442695
        %v882 = vpow.pop %v881
        %v883 = vmul.f32 %v757, 1.442695
        %v884 = vpow.pop %v883
        %v885 = vmul.f32 %v758, 1.442695
        %v886 = vpow.pop %v885
        %v887 = vpack.c.bf16 %v762, %v760
        %v888 = vpack.c.bf16 %v766, %v764
        %v889 = vpack.c.bf16 %v770, %v768
        %v890 = vpack.c.bf16 %v774, %v772
        %v891 = vpack.c.bf16 %v778, %v776
        %v892 = vpack.c.bf16 %v782, %v780
        %v893 = vpack.c.bf16 %v786, %v784
        %v894 = vpack.c.bf16 %v790, %v788
        %v895 = vpack.c.bf16 %v794, %v792
        %v896 = vpack.c.bf16 %v798, %v796
        %v897 = vpack.c.bf16 %v802, %v800
        %v898 = vpack.c.bf16 %v806, %v804
        %v899 = vpack.c.bf16 %v810, %v808
        %v900 = vpack.c.bf16 %v814, %v812
        %v901 = vpack.c.bf16 %v818, %v816
        %v902 = vpack.c.bf16 %v822, %v820
        %v903 = vpack.c.bf16 %v826, %v824
        %v904 = vpack.c.bf16 %v830, %v828
        %v905 = vpack.c.bf16 %v834, %v832
        %v906 = vpack.c.bf16 %v838, %v836
        %v907 = vpack.c.bf16 %v842, %v840
        %v908 = vpack.c.bf16 %v846, %v844
        %v909 = vpack.c.bf16 %v850, %v848
        %v910 = vpack.c.bf16 %v854, %v852
        %v911 = vpack.c.bf16 %v858, %v856
        %v912 = vpack.c.bf16 %v862, %v860
        %v913 = vpack.c.bf16 %v866, %v864
        %v914 = vpack.c.bf16 %v870, %v868
        %v915 = vpack.c.bf16 %v874, %v872
        %v916 = vpack.c.bf16 %v878, %v876
        %v917 = vpack.c.bf16 %v882, %v880
        %v918 = vpack.c.bf16 %v886, %v884
        %v919 = vld [vmem:[%s2] sm:$0xff]
        %v920 = vld [vmem:[%s2 + $0x8] sm:$0xff]
        %v921 = vpack.c.bf16 %v920, %v919
        %vm922 = vcmask 130048
        %v924 = vsel %vm922, %v887, 0
        %v927 = vsel %vm922, %v888, 0
        %v930 = vsel %vm922, %v889, 0
        %v933 = vsel %vm922, %v890, 0
        %v936 = vsel %vm922, %v891, 0
        %v939 = vsel %vm922, %v892, 0
        %v942 = vsel %vm922, %v893, 0
        %v945 = vsel %vm922, %v894, 0
        %v948 = vsel %vm922, %v895, 0
        %v951 = vsel %vm922, %v896, 0
        %v954 = vsel %vm922, %v897, 0
        %v957 = vsel %vm922, %v898, 0
        %v960 = vsel %vm922, %v899, 0
        %v963 = vsel %vm922, %v900, 0
        %v966 = vsel %vm922, %v901, 0
        %v969 = vsel %vm922, %v902, 0
        %v972 = vsel %vm922, %v903, 0
        %v975 = vsel %vm922, %v904, 0
        %v978 = vsel %vm922, %v905, 0
        %v981 = vsel %vm922, %v906, 0
        %v984 = vsel %vm922, %v907, 0
        %v987 = vsel %vm922, %v908, 0
        %v990 = vsel %vm922, %v909, 0
        %v993 = vsel %vm922, %v910, 0
        %v996 = vsel %vm922, %v911, 0
        %v999 = vsel %vm922, %v912, 0
        %v1002 = vsel %vm922, %v913, 0
        %v1005 = vsel %vm922, %v914, 0
        %v1008 = vsel %vm922, %v915, 0
        %v1011 = vsel %vm922, %v916, 0
        %v1014 = vsel %vm922, %v917, 0
        %v1017 = vsel %vm922, %v918, 0
        %1019 = vmatprep.subr.bf16.mxu0 0
        %1020 = vmatpush1.bf16.msra.mxu0 0
        %1021 = vmatprep.subr.bf16.mxu0 0
        %1022 = vmatpush1.bf16.msra.mxu0 0
        %1023 = vmatprep.subr.bf16.mxu0 0
        %1024 = vmatpush1.bf16.msra.mxu0 0
        %1025 = vmatprep.subr.bf16.mxu0 0
        %1026 = vmatpush1.bf16.msra.mxu0 0
        %1027 = vmatprep.subr.bf16.mxu0 0
        %1028 = vmatpush1.bf16.msra.mxu0 0
        %1029 = vmatprep.subr.bf16.mxu0 0
        %1030 = vmatpush1.bf16.msra.mxu0 0
        %1031 = vmatprep.subr.bf16.mxu0 0
        %1032 = vmatpush1.bf16.msra.mxu0 0
        %1033 = vmatprep.subr.bf16.mxu0 0
        %1034 = vmatpush1.bf16.msra.mxu0 %v921
        %1035 = vmatprep.subr.bf16.mxu0 0
        %1036 = vmatpush2.bf16.msra.mxu0 0
        %1037 = vmatprep.subr.bf16.mxu0 0
        %1038 = vmatpush2.bf16.msra.mxu0 0
        %1039 = vmatprep.subr.bf16.mxu0 0
        %1040 = vmatpush2.bf16.msra.mxu0 0
        %1041 = vmatprep.subr.bf16.mxu0 0
        %1042 = vmatpush2.bf16.msra.mxu0 0
        %1043 = vmatprep.subr.bf16.mxu0 0
        %1044 = vmatpush2.bf16.msra.mxu0 0
        %1045 = vmatprep.subr.bf16.mxu0 0
        %1046 = vmatpush2.bf16.msra.mxu0 0
        %1047 = vmatprep.subr.bf16.mxu0 0
        %1048 = vmatpush2.bf16.msra.mxu0 0
        %1049 = vmatprep.subr.bf16.mxu0 0
        %1050 = vmatpush2.bf16.msra.mxu0 0
        %1051 = vmatprep.mubr.bf16.mxu0 0
        %1052 = vmatmul.mubr.bf16.gmra.mxu0 %v924
        %v1053 = vpop.f32.mrf.mxu0
        %v1054 = vadd.f32 0.0, %v1053
        %v1055 = vpop.f32.mrf.mxu0
        %v1056 = vpop.f32.mrf.mxu0
        %v1057 = vadd.f32 0.0, %v1056
        %v1058 = vpop.f32.mrf.mxu0
        %1059 = vmatprep.mubr.bf16.mxu0 0
        %1060 = vmatmul.mubr.bf16.gmra.mxu0 %v927
        %v1061 = vpop.f32.mrf.mxu0
        %v1062 = vadd.f32 0.0, %v1061
        %v1063 = vpop.f32.mrf.mxu0
        %v1064 = vpop.f32.mrf.mxu0
        %v1065 = vadd.f32 0.0, %v1064
        %v1066 = vpop.f32.mrf.mxu0
        %1067 = vmatprep.mubr.bf16.mxu0 0
        %1068 = vmatmul.mubr.bf16.gmra.mxu0 %v930
        %v1069 = vpop.f32.mrf.mxu0
        %v1070 = vadd.f32 0.0, %v1069
        %v1071 = vpop.f32.mrf.mxu0
        %v1072 = vpop.f32.mrf.mxu0
        %v1073 = vadd.f32 0.0, %v1072
        %v1074 = vpop.f32.mrf.mxu0
        %1075 = vmatprep.mubr.bf16.mxu0 0
        %1076 = vmatmul.mubr.bf16.gmra.mxu0 %v933
        %v1077 = vpop.f32.mrf.mxu0
        %v1078 = vadd.f32 0.0, %v1077
        %v1079 = vpop.f32.mrf.mxu0
        %v1080 = vpop.f32.mrf.mxu0
        %v1081 = vadd.f32 0.0, %v1080
        %v1082 = vpop.f32.mrf.mxu0
        %1083 = vmatprep.mubr.bf16.mxu0 0
        %1084 = vmatmul.mubr.bf16.gmra.mxu0 %v936
        %v1085 = vpop.f32.mrf.mxu0
        %v1086 = vadd.f32 0.0, %v1085
        %v1087 = vpop.f32.mrf.mxu0
        %v1088 = vpop.f32.mrf.mxu0
        %v1089 = vadd.f32 0.0, %v1088
        %v1090 = vpop.f32.mrf.mxu0
        %1091 = vmatprep.mubr.bf16.mxu0 0
        %1092 = vmatmul.mubr.bf16.gmra.mxu0 %v939
        %v1093 = vpop.f32.mrf.mxu0
        %v1094 = vadd.f32 0.0, %v1093
        %v1095 = vpop.f32.mrf.mxu0
        %v1096 = vpop.f32.mrf.mxu0
        %v1097 = vadd.f32 0.0, %v1096
        %v1098 = vpop.f32.mrf.mxu0
        %1099 = vmatprep.mubr.bf16.mxu0 0
        %1100 = vmatmul.mubr.bf16.gmra.mxu0 %v942
        %v1101 = vpop.f32.mrf.mxu0
        %v1102 = vadd.f32 0.0, %v1101
        %v1103 = vpop.f32.mrf.mxu0
        %v1104 = vpop.f32.mrf.mxu0
        %v1105 = vadd.f32 0.0, %v1104
        %v1106 = vpop.f32.mrf.mxu0
        %1107 = vmatprep.mubr.bf16.mxu0 0
        %1108 = vmatmul.mubr.bf16.gmra.mxu0 %v945
        %v1109 = vpop.f32.mrf.mxu0
        %v1110 = vadd.f32 0.0, %v1109
        %v1111 = vpop.f32.mrf.mxu0
        %v1112 = vpop.f32.mrf.mxu0
        %v1113 = vadd.f32 0.0, %v1112
        %v1114 = vpop.f32.mrf.mxu0
        %1115 = vmatprep.mubr.bf16.mxu0 0
        %1116 = vmatmul.mubr.bf16.gmra.mxu0 %v948
        %v1117 = vpop.f32.mrf.mxu0
        %v1118 = vadd.f32 0.0, %v1117
        %v1119 = vpop.f32.mrf.mxu0
        %v1120 = vpop.f32.mrf.mxu0
        %v1121 = vadd.f32 0.0, %v1120
        %v1122 = vpop.f32.mrf.mxu0
        %1123 = vmatprep.mubr.bf16.mxu0 0
        %1124 = vmatmul.mubr.bf16.gmra.mxu0 %v951
        %v1125 = vpop.f32.mrf.mxu0
        %v1126 = vadd.f32 0.0, %v1125
        %v1127 = vpop.f32.mrf.mxu0
        %v1128 = vpop.f32.mrf.mxu0
        %v1129 = vadd.f32 0.0, %v1128
        %v1130 = vpop.f32.mrf.mxu0
        %1131 = vmatprep.mubr.bf16.mxu0 0
        %1132 = vmatmul.mubr.bf16.gmra.mxu0 %v954
        %v1133 = vpop.f32.mrf.mxu0
        %v1134 = vadd.f32 0.0, %v1133
        %v1135 = vpop.f32.mrf.mxu0
        %v1136 = vpop.f32.mrf.mxu0
        %v1137 = vadd.f32 0.0, %v1136
        %v1138 = vpop.f32.mrf.mxu0
        %1139 = vmatprep.mubr.bf16.mxu0 0
        %1140 = vmatmul.mubr.bf16.gmra.mxu0 %v957
        %v1141 = vpop.f32.mrf.mxu0
        %v1142 = vadd.f32 0.0, %v1141
        %v1143 = vpop.f32.mrf.mxu0
        %v1144 = vpop.f32.mrf.mxu0
        %v1145 = vadd.f32 0.0, %v1144
        %v1146 = vpop.f32.mrf.mxu0
        %1147 = vmatprep.mubr.bf16.mxu0 0
        %1148 = vmatmul.mubr.bf16.gmra.mxu0 %v960
        %v1149 = vpop.f32.mrf.mxu0
        %v1150 = vadd.f32 0.0, %v1149
        %v1151 = vpop.f32.mrf.mxu0
        %v1152 = vpop.f32.mrf.mxu0
        %v1153 = vadd.f32 0.0, %v1152
        %v1154 = vpop.f32.mrf.mxu0
        %1155 = vmatprep.mubr.bf16.mxu0 0
        %1156 = vmatmul.mubr.bf16.gmra.mxu0 %v963
        %v1157 = vpop.f32.mrf.mxu0
        %v1158 = vadd.f32 0.0, %v1157
        %v1159 = vpop.f32.mrf.mxu0
        %v1160 = vpop.f32.mrf.mxu0
        %v1161 = vadd.f32 0.0, %v1160
        %v1162 = vpop.f32.mrf.mxu0
        %1163 = vmatprep.mubr.bf16.mxu0 0
        %1164 = vmatmul.mubr.bf16.gmra.mxu0 %v966
        %v1165 = vpop.f32.mrf.mxu0
        %v1166 = vadd.f32 0.0, %v1165
        %v1167 = vpop.f32.mrf.mxu0
        %v1168 = vpop.f32.mrf.mxu0
        %v1169 = vadd.f32 0.0, %v1168
        %v1170 = vpop.f32.mrf.mxu0
        %1171 = vmatprep.mubr.bf16.mxu0 0
        %1172 = vmatmul.mubr.bf16.gmra.mxu0 %v969
        %v1173 = vpop.f32.mrf.mxu0
        %v1174 = vadd.f32 0.0, %v1173
        %v1175 = vpop.f32.mrf.mxu0
        %v1176 = vpop.f32.mrf.mxu0
        %v1177 = vadd.f32 0.0, %v1176
        %v1178 = vpop.f32.mrf.mxu0
        %1179 = vmatprep.mubr.bf16.mxu0 0
        %1180 = vmatmul.mubr.bf16.gmra.mxu0 %v972
        %v1181 = vpop.f32.mrf.mxu0
        %v1182 = vadd.f32 0.0, %v1181
        %v1183 = vpop.f32.mrf.mxu0
        %v1184 = vpop.f32.mrf.mxu0
        %v1185 = vadd.f32 0.0, %v1184
        %v1186 = vpop.f32.mrf.mxu0
        %1187 = vmatprep.mubr.bf16.mxu0 0
        %1188 = vmatmul.mubr.bf16.gmra.mxu0 %v975
        %v1189 = vpop.f32.mrf.mxu0
        %v1190 = vadd.f32 0.0, %v1189
        %v1191 = vpop.f32.mrf.mxu0
        %v1192 = vpop.f32.mrf.mxu0
        %v1193 = vadd.f32 0.0, %v1192
        %v1194 = vpop.f32.mrf.mxu0
        %1195 = vmatprep.mubr.bf16.mxu0 0
        %1196 = vmatmul.mubr.bf16.gmra.mxu0 %v978
        %v1197 = vpop.f32.mrf.mxu0
        %v1198 = vadd.f32 0.0, %v1197
        %v1199 = vpop.f32.mrf.mxu0
        %v1200 = vpop.f32.mrf.mxu0
        %v1201 = vadd.f32 0.0, %v1200
        %v1202 = vpop.f32.mrf.mxu0
        %1203 = vmatprep.mubr.bf16.mxu0 0
        %1204 = vmatmul.mubr.bf16.gmra.mxu0 %v981
        %v1205 = vpop.f32.mrf.mxu0
        %v1206 = vadd.f32 0.0, %v1205
        %v1207 = vpop.f32.mrf.mxu0
        %v1208 = vpop.f32.mrf.mxu0
        %v1209 = vadd.f32 0.0, %v1208
        %v1210 = vpop.f32.mrf.mxu0
        %1211 = vmatprep.mubr.bf16.mxu0 0
        %1212 = vmatmul.mubr.bf16.gmra.mxu0 %v984
        %v1213 = vpop.f32.mrf.mxu0
        %v1214 = vadd.f32 0.0, %v1213
        %v1215 = vpop.f32.mrf.mxu0
        %v1216 = vpop.f32.mrf.mxu0
        %v1217 = vadd.f32 0.0, %v1216
        %v1218 = vpop.f32.mrf.mxu0
        %1219 = vmatprep.mubr.bf16.mxu0 0
        %1220 = vmatmul.mubr.bf16.gmra.mxu0 %v987
        %v1221 = vpop.f32.mrf.mxu0
        %v1222 = vadd.f32 0.0, %v1221
        %v1223 = vpop.f32.mrf.mxu0
        %v1224 = vpop.f32.mrf.mxu0
        %v1225 = vadd.f32 0.0, %v1224
        %v1226 = vpop.f32.mrf.mxu0
        %1227 = vmatprep.mubr.bf16.mxu0 0
        %1228 = vmatmul.mubr.bf16.gmra.mxu0 %v990
        %v1229 = vpop.f32.mrf.mxu0
        %v1230 = vadd.f32 0.0, %v1229
        %v1231 = vpop.f32.mrf.mxu0
        %v1232 = vpop.f32.mrf.mxu0
        %v1233 = vadd.f32 0.0, %v1232
        %v1234 = vpop.f32.mrf.mxu0
        %1235 = vmatprep.mubr.bf16.mxu0 0
        %1236 = vmatmul.mubr.bf16.gmra.mxu0 %v993
        %v1237 = vpop.f32.mrf.mxu0
        %v1238 = vadd.f32 0.0, %v1237
        %v1239 = vpop.f32.mrf.mxu0
        %v1240 = vpop.f32.mrf.mxu0
        %v1241 = vadd.f32 0.0, %v1240
        %v1242 = vpop.f32.mrf.mxu0
        %1243 = vmatprep.mubr.bf16.mxu0 0
        %1244 = vmatmul.mubr.bf16.gmra.mxu0 %v996
        %v1245 = vpop.f32.mrf.mxu0
        %v1246 = vadd.f32 0.0, %v1245
        %v1247 = vpop.f32.mrf.mxu0
        %v1248 = vpop.f32.mrf.mxu0
        %v1249 = vadd.f32 0.0, %v1248
        %v1250 = vpop.f32.mrf.mxu0
        %1251 = vmatprep.mubr.bf16.mxu0 0
        %1252 = vmatmul.mubr.bf16.gmra.mxu0 %v999
        %v1253 = vpop.f32.mrf.mxu0
        %v1254 = vadd.f32 0.0, %v1253
        %v1255 = vpop.f32.mrf.mxu0
        %v1256 = vpop.f32.mrf.mxu0
        %v1257 = vadd.f32 0.0, %v1256
        %v1258 = vpop.f32.mrf.mxu0
        %1259 = vmatprep.mubr.bf16.mxu0 0
        %1260 = vmatmul.mubr.bf16.gmra.mxu0 %v1002
        %v1261 = vpop.f32.mrf.mxu0
        %v1262 = vadd.f32 0.0, %v1261
        %v1263 = vpop.f32.mrf.mxu0
        %v1264 = vpop.f32.mrf.mxu0
        %v1265 = vadd.f32 0.0, %v1264
        %v1266 = vpop.f32.mrf.mxu0
        %1267 = vmatprep.mubr.bf16.mxu0 0
        %1268 = vmatmul.mubr.bf16.gmra.mxu0 %v1005
        %v1269 = vpop.f32.mrf.mxu0
        %v1270 = vadd.f32 0.0, %v1269
        %v1271 = vpop.f32.mrf.mxu0
        %v1272 = vpop.f32.mrf.mxu0
        %v1273 = vadd.f32 0.0, %v1272
        %v1274 = vpop.f32.mrf.mxu0
        %1275 = vmatprep.mubr.bf16.mxu0 0
        %1276 = vmatmul.mubr.bf16.gmra.mxu0 %v1008
        %v1277 = vpop.f32.mrf.mxu0
        %v1278 = vadd.f32 0.0, %v1277
        %v1279 = vpop.f32.mrf.mxu0
        %v1280 = vpop.f32.mrf.mxu0
        %v1281 = vadd.f32 0.0, %v1280
        %v1282 = vpop.f32.mrf.mxu0
        %1283 = vmatprep.mubr.bf16.mxu0 0
        %1284 = vmatmul.mubr.bf16.gmra.mxu0 %v1011
        %v1285 = vpop.f32.mrf.mxu0
        %v1286 = vadd.f32 0.0, %v1285
        %v1287 = vpop.f32.mrf.mxu0
        %v1288 = vpop.f32.mrf.mxu0
        %v1289 = vadd.f32 0.0, %v1288
        %v1290 = vpop.f32.mrf.mxu0
        %1291 = vmatprep.mubr.bf16.mxu0 0
        %1292 = vmatmul.mubr.bf16.gmra.mxu0 %v1014
        %v1293 = vpop.f32.mrf.mxu0
        %v1294 = vadd.f32 0.0, %v1293
        %v1295 = vpop.f32.mrf.mxu0
        %v1296 = vpop.f32.mrf.mxu0
        %v1297 = vadd.f32 0.0, %v1296
        %v1298 = vpop.f32.mrf.mxu0
        %1299 = vmatprep.mubr.bf16.mxu0 0
        %1300 = vmatmul.mubr.bf16.gmra.mxu0 %v1017
        %v1301 = vpop.f32.mrf.mxu0
        %v1302 = vadd.f32 0.0, %v1301
        %v1303 = vpop.f32.mrf.mxu0
        %v1304 = vpop.f32.mrf.mxu0
        %v1305 = vadd.f32 0.0, %v1304
        %v1306 = vpop.f32.mrf.mxu0
        %1307 = vdwg.mxu0
        %1308 = vst [vmem:[%s191] sm:$0xff] %v1054
        %1309 = vst [vmem:[%s191 + $0x8] sm:$0xff] %v1057
        %1310 = vst [vmem:[%s191 + $0x10] sm:$0xff] %v1062
        %1311 = vst [vmem:[%s191 + $0x18] sm:$0xff] %v1065
        %1312 = vst [vmem:[%s191 + $0x20] sm:$0xff] %v1070
        %1313 = vst [vmem:[%s191 + $0x28] sm:$0xff] %v1073
        %1314 = vst [vmem:[%s191 + $0x30] sm:$0xff] %v1078
        %1315 = vst [vmem:[%s191 + $0x38] sm:$0xff] %v1081
        %1316 = vst [vmem:[%s191 + $0x40] sm:$0xff] %v1086
        %1317 = vst [vmem:[%s191 + $0x48] sm:$0xff] %v1089
        %1318 = vst [vmem:[%s191 + $0x50] sm:$0xff] %v1094
        %1319 = vst [vmem:[%s191 + $0x58] sm:$0xff] %v1097
        %1320 = vst [vmem:[%s191 + $0x60] sm:$0xff] %v1102
        %1321 = vst [vmem:[%s191 + $0x68] sm:$0xff] %v1105
        %1322 = vst [vmem:[%s191 + $0x70] sm:$0xff] %v1110
        %1323 = vst [vmem:[%s191 + $0x78] sm:$0xff] %v1113
        %1324 = vst [vmem:[%s191 + $0x80] sm:$0xff] %v1118
        %1325 = vst [vmem:[%s191 + $0x88] sm:$0xff] %v1121
        %1326 = vst [vmem:[%s191 + $0x90] sm:$0xff] %v1126
        %1327 = vst [vmem:[%s191 + $0x98] sm:$0xff] %v1129
        %1328 = vst [vmem:[%s191 + $0xa0] sm:$0xff] %v1134
        %1329 = vst [vmem:[%s191 + $0xa8] sm:$0xff] %v1137
        %1330 = vst [vmem:[%s191 + $0xb0] sm:$0xff] %v1142
        %1331 = vst [vmem:[%s191 + $0xb8] sm:$0xff] %v1145
        %1332 = vst [vmem:[%s191 + $0xc0] sm:$0xff] %v1150
        %1333 = vst [vmem:[%s191 + $0xc8] sm:$0xff] %v1153
        %1334 = vst [vmem:[%s191 + $0xd0] sm:$0xff] %v1158
        %1335 = vst [vmem:[%s191 + $0xd8] sm:$0xff] %v1161
        %1336 = vst [vmem:[%s191 + $0xe0] sm:$0xff] %v1166
        %1337 = vst [vmem:[%s191 + $0xe8] sm:$0xff] %v1169
        %1338 = vst [vmem:[%s191 + $0xf0] sm:$0xff] %v1174
        %1339 = vst [vmem:[%s191 + $0xf8] sm:$0xff] %v1177
        %1340 = vst [vmem:[%s191 + $0x100] sm:$0xff] %v1182
        %1341 = vst [vmem:[%s191 + $0x108] sm:$0xff] %v1185
        %1342 = vst [vmem:[%s191 + $0x110] sm:$0xff] %v1190
        %1343 = vst [vmem:[%s191 + $0x118] sm:$0xff] %v1193
        %1344 = vst [vmem:[%s191 + $0x120] sm:$0xff] %v1198
        %1345 = vst [vmem:[%s191 + $0x128] sm:$0xff] %v1201
        %1346 = vst [vmem:[%s191 + $0x130] sm:$0xff] %v1206
        %1347 = vst [vmem:[%s191 + $0x138] sm:$0xff] %v1209
        %1348 = vst [vmem:[%s191 + $0x140] sm:$0xff] %v1214
        %1349 = vst [vmem:[%s191 + $0x148] sm:$0xff] %v1217
        %1350 = vst [vmem:[%s191 + $0x150] sm:$0xff] %v1222
        %1351 = vst [vmem:[%s191 + $0x158] sm:$0xff] %v1225
        %1352 = vst [vmem:[%s191 + $0x160] sm:$0xff] %v1230
        %1353 = vst [vmem:[%s191 + $0x168] sm:$0xff] %v1233
        %1354 = vst [vmem:[%s191 + $0x170] sm:$0xff] %v1238
        %1355 = vst [vmem:[%s191 + $0x178] sm:$0xff] %v1241
        %1356 = vst [vmem:[%s191 + $0x180] sm:$0xff] %v1246
        %1357 = vst [vmem:[%s191 + $0x188] sm:$0xff] %v1249
        %1358 = vst [vmem:[%s191 + $0x190] sm:$0xff] %v1254
        %1359 = vst [vmem:[%s191 + $0x198] sm:$0xff] %v1257
        %1360 = vst [vmem:[%s191 + $0x1a0] sm:$0xff] %v1262
        %1361 = vst [vmem:[%s191 + $0x1a8] sm:$0xff] %v1265
        %1362 = vst [vmem:[%s191 + $0x1b0] sm:$0xff] %v1270
        %1363 = vst [vmem:[%s191 + $0x1b8] sm:$0xff] %v1273
        %1364 = vst [vmem:[%s191 + $0x1c0] sm:$0xff] %v1278
        %1365 = vst [vmem:[%s191 + $0x1c8] sm:$0xff] %v1281
        %1366 = vst [vmem:[%s191 + $0x1d0] sm:$0xff] %v1286
        %1367 = vst [vmem:[%s191 + $0x1d8] sm:$0xff] %v1289
        %1368 = vst [vmem:[%s191 + $0x1e0] sm:$0xff] %v1294
        %1369 = vst [vmem:[%s191 + $0x1e8] sm:$0xff] %v1297
        %1370 = vst [vmem:[%s191 + $0x1f0] sm:$0xff] %v1302
        %1371 = vst [vmem:[%s191 + $0x1f8] sm:$0xff] %v1305
        %s1372 = sand.u32 %s115, 1
        %s1373 = scalar_lea.sflag [#allocation3], %s1372
        %s1374 = sand.u32 %s115, 1
        %s1375 = smul.addr %s1374, 512
        %s1376 = scalar_lea.vmem [#allocation2], %s1375
        // Predicated region
        $region37: #{conv1d_softmax_etm.3} parent=35 // pred_check
          %p1377 = pneg %p125
        $region38: #{conv1d_softmax_etm.3} parent=35 // pred_check_branch
          %1379 = sbr.rel (%p1377) target = $region40
        $region39: #{conv1d_softmax_etm.3} parent=35 // pred_region
          %s1380 = smul.u32 64, %s18
          %s1382 = ssub.s32 8192, 8192
          %1383 = vsyncadd %s1373, %s1382
          %s1384 = smul.addr %s1380, 128
          %s1385 = scalar_lea.hbm %s4, %s1384
          %s1386 = sshll.u32 %s1376, 4
          %s1387 = int_to_ptr.vmem [resolvable:$true] %s1386
          %1392 = dma.vmem_to_hbm [thread:$0]  %s1387, 8192, %s1385, %s1373, 128, 128, 8
        $region40: #{conv1d_softmax_etm.3} parent=35 // pred_fallthru
          _
      $region36: #{conv1d_softmax_etm.3} parent=5 // pred_fallthru
        _
      %p1393 = scmp.le.s32.totalorder 2, %s13
      // Predicated region
      $region41: #{conv1d_softmax_etm.3} parent=5 // pred_check
        %p1394 = pneg %p1393
      $region42: #{conv1d_softmax_etm.3} parent=5 // pred_check_branch
        %1396 = sbr.rel (%p1394) target = $region44
      $region43: #{conv1d_softmax_etm.3} parent=5 // pred_region
        %s1397 = ssub.s32 %s13, 2
        // Predicated region
        $region45: #{conv1d_softmax_etm.3} parent=43 // pred_check
          %p1398 = pneg %p131
        $region46: #{conv1d_softmax_etm.3} parent=43 // pred_check_branch
          %1400 = sbr.rel (%p1398) target = $region48
        $region47: #{conv1d_softmax_etm.3} parent=43 // pred_region
          %s1401 = sand.u32 %s116, 1
          %s1402 = scalar_lea.sflag [#allocation3], %s1401
          %s1403 = sand.u32 %s116, 1
          %s1404 = smul.addr %s1403, 512
          %s1405 = scalar_lea.vmem [#allocation2], %s1404
          %1406 = dma.done %s1402, 8192
        $region48: #{conv1d_softmax_etm.3} parent=43 // pred_fallthru
          _
      $region44: #{conv1d_softmax_etm.3} parent=5 // pred_fallthru
        _
    $region6: #{conv1d_softmax_etm.3} parent=1 // loop_footer
      %s17 = sadd.s32 1, %s13
    $region7: #{conv1d_softmax_etm.3} parent=1 // loop_footer_branch
      %12 = sbr.rel target = $region3
    $region8: #{conv1d_softmax_etm.3} parent=1 // loop_exit
      _
    %1407 = vsyncpa [#allocation3], 1
    %s1408 = scalar_lea.sflag [#allocation3], 1
    %1409 = vsyncpa %s1408, 1

</llo_original>
